<compile_context>
chip_gen: v5e
topology: v5e:2x2
jax: 0.10.0
libtpu: 0.0.40
codegen_flags: <defaults>
</compile_context>

<pallas_src>
import math
from functools import partial

import numpy as np
import jax
import jax.numpy as jnp
from jax.experimental import pallas as pl
from jax.experimental.pallas import tpu as pltpu

# bf16 matmul operands (f32 accumulation) — MXU-native on v5e/v6e/v7x and halves
# weight HBM/VMEM traffic.  Normalization / softmax math stays f32 everywhere.
MATMUL_DTYPE = jnp.bfloat16

# Plain Python float: a jnp scalar here would be captured as a kernel constant,
# which pallas_call rejects.
NEG_BIG = -1e30


def _round_up(x, m):
    return -(-x // m) * m


def _pick_batch_block(B, max_blk=4):
    """Largest divisor of B (<= max_blk) that still leaves >=2 parallel batch steps
    for the v7x megacore whenever B > 1."""
    divs = [d for d in range(1, min(B, max_blk) + 1) if B % d == 0]
    best = max(divs)
    if B > 1 and B // best < 2:
        smaller = [d for d in divs if B // d >= 2]
        if smaller:
            best = max(smaller)
    return best


def _compiler_params(sem, blocks, scratch_bytes=0):
    """dimension_semantics + explicit scoped-VMEM limit when the double-buffered
    working set exceeds the 32 MiB default (real volleyball sizes)."""
    need = 2 * sum(math.prod(s) * np.dtype(d).itemsize for s, d in blocks) + scratch_bytes
    need = int(need * 1.25) + (1 << 20)
    kwargs = dict(dimension_semantics=sem)
    if need > (32 << 20):
        kwargs["vmem_limit_bytes"] = min(need, 96 << 20)
    return pltpu.CompilerParams(**kwargs)


# ---------------------------------------------------------------------------
# Kernel 1: fc_emb_1 + LayerNorm([NFB]) + ReLU + self-inclusive top-3 KNN mean.
#   grid = (B // b_blk, nk); K-reduction axis with a VMEM f32 accumulator.
# ---------------------------------------------------------------------------
def make_emb_knn_kernel(Bblk, T, N):
    def kernel(x_ref, w_ref, b_ref, g_ref, beta_ref, o_ref, acc_ref):
        ki = pl.program_id(1)

        @pl.when(ki == 0)
        def _():
            acc_ref[...] = jnp.zeros_like(acc_ref)

        x = x_ref[...].reshape(Bblk * T * N, x_ref.shape[-1])            # bf16 operand
        acc_ref[...] += jnp.dot(x, w_ref[...], preferred_element_type=jnp.float32)

        @pl.when(ki == pl.num_programs(1) - 1)
        def _():
            # fc_emb_1 bias + nl_emb_1 (LayerNorm over NFB) + ReLU, all f32
            y = acc_ref[...] + b_ref[...]
            mu = jnp.mean(y, axis=-1, keepdims=True)
            var = jnp.mean((y - mu) ** 2, axis=-1, keepdims=True)
            feat = jnp.maximum((y - mu) * jax.lax.rsqrt(var + 1e-5)
                               * g_ref[...] + beta_ref[...], 0.0)         # [Bblk*TN, NFB]
            nfb = feat.shape[-1]
            feat3 = feat.reshape(Bblk * T, N, nfb)

            # gram matrices for all Bblk*T frames in one batched einsum
            gram = jnp.einsum("tnd,tmd->tnm", feat3, feat3,
                              preferred_element_type=jnp.float32)         # [Bblk*T, N, N]
            row = jax.lax.broadcasted_iota(jnp.int32, gram.shape, 1)
            col = jax.lax.broadcasted_iota(jnp.int32, gram.shape, 2)

            # W = I + one_hot(top1) + one_hot(top2) + one_hot(top3); self-inclusive
            # like torch.topk on the full gram (diagonal not excluded).
            wsel = (row == col).astype(jnp.float32)
            work = gram
            for _ in range(3):                       # top-3 (largest, distinct)
                mval = jnp.max(work, axis=-1, keepdims=True)
                idx = jnp.min(jnp.where(work >= mval, col, N),
                              axis=-1, keepdims=True)                     # first-occurrence argmax
                sel = col == idx
                wsel = wsel + sel.astype(jnp.float32)
                work = jnp.where(sel, NEG_BIG, work)

            # (x[m] + x[top1] + x[top2] + x[top3]) / 4 as one small batched matmul
            agg = jnp.einsum("tnm,tmd->tnd", wsel, feat3,
                             preferred_element_type=jnp.float32)
            o_ref[...] = (agg * 0.25).reshape(Bblk, T * N, nfb)

    return kernel


def emb_knn(x, w, b, gamma, beta, T, N, tk_max=1024):
    """x: [B, T*N, K*K*D] -> [B, T*N, NFB]."""
    B, TN, KKD = x.shape
    NFB = w.shape[1]
    b_blk = _pick_batch_block(B)
    tk = KKD if KKD <= tk_max else tk_max
    Kp = _round_up(KKD, tk)
    x = x.astype(MATMUL_DTYPE)
    w = w.astype(MATMUL_DTYPE)
    if Kp != KKD:        # zero-pad the contraction dim (exact: padded cols contribute 0)
        x = jnp.pad(x, ((0, 0), (0, 0), (0, Kp - KKD)))
        w = jnp.pad(w, ((0, Kp - KKD), (0, 0)))
    nk = Kp // tk
    blocks = [((b_blk, TN, tk), MATMUL_DTYPE), ((tk, NFB), MATMUL_DTYPE),
              ((1, NFB), jnp.float32), ((1, NFB), jnp.float32), ((1, NFB), jnp.float32),
              ((b_blk, TN, NFB), jnp.float32)]
    return pl.pallas_call(
        make_emb_knn_kernel(b_blk, T, N),
        out_shape=jax.ShapeDtypeStruct((B, TN, NFB), jnp.float32),
        grid=(B // b_blk, nk),
        in_specs=[
            pl.BlockSpec((b_blk, TN, tk), lambda bi, ki: (bi, 0, ki)),
            pl.BlockSpec((tk, NFB), lambda bi, ki: (ki, 0)),
            pl.BlockSpec((1, NFB), lambda bi, ki: (0, 0)),
            pl.BlockSpec((1, NFB), lambda bi, ki: (0, 0)),
            pl.BlockSpec((1, NFB), lambda bi, ki: (0, 0)),
        ],
        out_specs=pl.BlockSpec((b_blk, TN, NFB), lambda bi, ki: (bi, 0, 0)),
        scratch_shapes=[pltpu.VMEM((b_blk * TN, NFB), jnp.float32)],
        compiler_params=_compiler_params(("parallel", "arbitrary"), blocks,
                                         scratch_bytes=b_blk * TN * NFB * 4),
    )(x, w, b, gamma, beta)


# ---------------------------------------------------------------------------
# Kernel 2: GCN_Module — grid (B, NG); per-graph weight tiles stream through VMEM,
#           per-graph sum kept in a VMEM accumulator (init at g==0, store at g==NG-1).
# ---------------------------------------------------------------------------
def make_gcn_kernel(NFR, TN, TN_pad):
    inv_sqrt_nfr = 1.0 / math.sqrt(NFR)

    def kernel(x_ref, mask_ref, wtp_ref, btp_ref, wg_ref, lng_ref, lnb_ref,
               out_ref, rel_ref, acc_ref):
        g = pl.program_id(1)

        @pl.when(g == 0)
        def _():
            acc_ref[...] = jnp.zeros_like(acc_ref)

        x = x_ref[0]                                                     # [TN, NFG] f32
        xm = x.astype(MATMUL_DTYPE)

        # theta & phi of this graph in one (NFG, 2*NFR)-wide matmul
        tp = jnp.dot(xm, wtp_ref[0], preferred_element_type=jnp.float32) + btp_ref[0]
        theta = tp[:, :NFR].astype(MATMUL_DTYPE)
        phi = tp[:, NFR:].astype(MATMUL_DTYPE)

        # similarity: contract last dims directly (no explicit XLU transpose)
        sim = jax.lax.dot_general(theta, phi, (((1,), (1,)), ((), ())),
                                  preferred_element_type=jnp.float32) * inv_sqrt_nfr
        sim = jnp.where(mask_ref[0] > 0.5, NEG_BIG, sim)

        # masked softmax along last dim (relation graph), f32
        m = jnp.max(sim, axis=-1, keepdims=True)
        e = jnp.exp(sim - m)
        rel = e / jnp.sum(e, axis=-1, keepdims=True)

        z = jnp.dot(rel.astype(MATMUL_DTYPE), xm, preferred_element_type=jnp.float32)
        y = jnp.dot(z.astype(MATMUL_DTYPE), wg_ref[0], preferred_element_type=jnp.float32)

        # LayerNorm([T*N, NFG]) over BOTH trailing dims (volleyball branch), f32
        mu = jnp.mean(y, axis=(0, 1), keepdims=True)
        var = jnp.mean((y - mu) ** 2, axis=(0, 1), keepdims=True)
        yn = (y - mu) * jax.lax.rsqrt(var + 1e-5)
        acc_ref[...] += jnp.maximum(yn * lng_ref[0] + lnb_ref[0], 0.0)   # affine + ReLU, summed

        @pl.when(g == pl.num_programs(1) - 1)
        def _():
            out_ref[0] = acc_ref[...]
            # only the last graph's relation survives (reference semantics);
            # lane-pad so the store is lane-dense, sliced back in JAX.
            rel_ref[0] = jnp.pad(rel, ((0, 0), (0, TN_pad - TN)))

    return kernel


def gcn_module(x, mask, p):
    B, TN, NFG = x.shape
    NG, _, NFR = p["w_theta"].shape
    TN_pad = _round_up(TN, 128)
    # concatenate theta|phi along the output dim -> one wider MXU matmul per graph
    wtp = jnp.concatenate([p["w_theta"], p["w_phi"]], axis=-1).astype(MATMUL_DTYPE)
    btp = jnp.concatenate([p["b_theta"], p["b_phi"]], axis=-1)
    wg = p["w_gcn"].astype(MATMUL_DTYPE)
    blocks = [((1, TN, NFG), jnp.float32), ((1, TN, TN), jnp.float32),
              ((1, NFG, 2 * NFR), MATMUL_DTYPE), ((1, 1, 2 * NFR), jnp.float32),
              ((1, NFG, NFG), MATMUL_DTYPE),
              ((1, TN, NFG), jnp.float32), ((1, TN, NFG), jnp.float32),
              ((1, TN, NFG), jnp.float32), ((1, TN, TN_pad), jnp.float32)]
    out, rel_pad = pl.pallas_call(
        make_gcn_kernel(NFR, TN, TN_pad),
        out_shape=(jax.ShapeDtypeStruct((B, TN, NFG), jnp.float32),
                   jax.ShapeDtypeStruct((B, TN, TN_pad), jnp.float32)),
        grid=(B, NG),
        in_specs=[
            pl.BlockSpec((1, TN, NFG), lambda b, g: (b, 0, 0)),          # graph features
            pl.BlockSpec((1, TN, TN), lambda b, g: (b, 0, 0)),           # position mask
            pl.BlockSpec((1, NFG, 2 * NFR), lambda b, g: (g, 0, 0)),     # theta|phi weights
            pl.BlockSpec((1, 1, 2 * NFR), lambda b, g: (g, 0, 0)),       # theta|phi biases
            pl.BlockSpec((1, NFG, NFG), lambda b, g: (g, 0, 0)),         # fc_gcn weight
            pl.BlockSpec((1, TN, NFG), lambda b, g: (g, 0, 0)),          # LayerNorm gamma
            pl.BlockSpec((1, TN, NFG), lambda b, g: (g, 0, 0)),          # LayerNorm beta
        ],
        out_specs=(pl.BlockSpec((1, TN, NFG), lambda b, g: (b, 0, 0)),
                   pl.BlockSpec((1, TN, TN_pad), lambda b, g: (b, 0, 0))),
        scratch_shapes=[pltpu.VMEM((TN, NFG), jnp.float32)],
        compiler_params=_compiler_params(("parallel", "arbitrary"), blocks,
                                         scratch_bytes=TN * NFG * 4),
    )(x, mask, wtp, btp, wg, p["ln_g"], p["ln_b"])
    return out, rel_pad[:, :, :TN]


# ---------------------------------------------------------------------------
# Kernel 3: fused heads — fc_actions (+ frame mean) and fc_activities
#           (box max-pool + frame mean), outputs padded to 128 lanes.
# ---------------------------------------------------------------------------
def make_heads_kernel(T, N):
    def kernel(x_ref, aw_ref, ab_ref, cw_ref, cb_ref, act_ref, acty_ref):
        x = x_ref[0]                                                     # [T*N, NFG]
        xm = x.astype(MATMUL_DTYPE)

        # fc_actions on every box, then mean over frames
        a = jnp.dot(xm, aw_ref[...], preferred_element_type=jnp.float32) + ab_ref[...]
        act_ref[0] = jnp.mean(a.reshape(T, N, a.shape[-1]), axis=0)      # [N, Apad]

        # max-pool over boxes per frame, fc_activities, mean over frames
        pooled = jnp.max(x.reshape(T, N, x.shape[-1]), axis=1)           # [T, NFG]
        c = jnp.dot(pooled.astype(MATMUL_DTYPE), cw_ref[...],
                    preferred_element_type=jnp.float32) + cb_ref[...]    # [T, Cpad]
        acty_ref[0] = jnp.mean(c, axis=0, keepdims=True)                 # [1, Cpad]

    return kernel


def fused_heads(boxes_states, act_w, act_b, acty_w, acty_b, T, N):
    # TODO(synk): this could be folded into the last gcn_module pallas_call to skip one
    # HBM round-trip of `boxes_states`; kept separate for clarity (small absolute cost).
    B, TN, NFG = boxes_states.shape
    A, C = act_w.shape[1], acty_w.shape[1]
    Apad, Cpad = _round_up(A, 128), _round_up(C, 128)
    aw = jnp.pad(act_w, ((0, 0), (0, Apad - A))).astype(MATMUL_DTYPE)
    ab = jnp.pad(act_b, ((0, 0), (0, Apad - A)))
    cw = jnp.pad(acty_w, ((0, 0), (0, Cpad - C))).astype(MATMUL_DTYPE)
    cb = jnp.pad(acty_b, ((0, 0), (0, Cpad - C)))
    blocks = [((1, TN, NFG), jnp.float32), ((NFG, Apad), MATMUL_DTYPE),
              ((1, Apad), jnp.float32), ((NFG, Cpad), MATMUL_DTYPE), ((1, Cpad), jnp.float32),
              ((1, N, Apad), jnp.float32), ((1, 1, Cpad), jnp.float32)]
    actions_pad, acty_pad = pl.pallas_call(
        make_heads_kernel(T, N),
        out_shape=(jax.ShapeDtypeStruct((B, N, Apad), jnp.float32),
                   jax.ShapeDtypeStruct((B, 1, Cpad), jnp.float32)),
        grid=(B,),
        in_specs=[
            pl.BlockSpec((1, TN, NFG), lambda b: (b, 0, 0)),
            pl.BlockSpec((NFG, Apad), lambda b: (0, 0)),
            pl.BlockSpec((1, Apad), lambda b: (0, 0)),
            pl.BlockSpec((NFG, Cpad), lambda b: (0, 0)),
            pl.BlockSpec((1, Cpad), lambda b: (0, 0)),
        ],
        out_specs=(pl.BlockSpec((1, N, Apad), lambda b: (b, 0, 0)),
                   pl.BlockSpec((1, 1, Cpad), lambda b: (b, 0, 0))),
        compiler_params=_compiler_params(("parallel",), blocks),
    )(boxes_states, aw, ab, cw, cb)
    return actions_pad[:, :, :A], acty_pad[:, 0, :C]


# ---------------------------------------------------------------------------
# Full forward (tiny glue in plain JAX, hot path in the kernels above)
# ---------------------------------------------------------------------------
def gcnnet_volleyball_forward(params, boxes_features_raw, boxes_in, cfg):
    B, T, N, KKD = boxes_features_raw.shape
    OH, OW = cfg["out_size"]
    TN = T * N

    # TODO(synk): Inception-v3/VGG backbone, multiscale bilinear interpolation and RoIAlign are
    # pretrained torchvision ops with no clean Pallas equivalent; `boxes_features_raw` stands in
    # for the RoI-aligned crop features [B, T, N, K*K*D] that feed fc_emb_1.

    # fc_emb_1 + nl_emb_1 + ReLU + self-inclusive top-3 KNN mean (one fused Pallas kernel)
    x = boxes_features_raw.reshape(B, TN, KKD).astype(jnp.float32)
    graph = emb_knn(x, params["emb_w"], params["emb_b"],
                    params["emb_ln_g"], params["emb_ln_b"], T, N)        # [B, TN, NFB==NFG]

    # position mask (mirrors the pre-loop glue inside GCN_Module.forward)
    boxes_in_flat = boxes_in.reshape(B * T * N, 4).astype(jnp.float32)
    cx = (boxes_in_flat[:, 0] + boxes_in_flat[:, 2]) * 0.5
    cy = (boxes_in_flat[:, 1] + boxes_in_flat[:, 3]) * 0.5
    pos = jnp.stack([cx, cy], axis=-1).reshape(B, TN, 2)
    d2 = jnp.sum((pos[:, :, None, :] - pos[:, None, :, :]) ** 2, axis=-1)
    dist = jnp.sqrt(jnp.maximum(d2, 0.0))
    mask = (dist > cfg["pos_threshold"] * OW).astype(jnp.float32)        # [B, TN, TN]

    # GCN layers (Pallas); relation graph of the last graph is returned per layer (unused here,
    # as in the reference GCNnet forward)
    relation = None
    for layer_params in params["gcn_layers"]:
        graph, relation = gcn_module(graph, mask, layer_params)
    del relation

    # dropout_global (applied twice) is identity at p = train_dropout_prob = 0;
    # the reference has no residual add before the heads.
    actions, activities = fused_heads(
        graph, params["act_w"], params["act_b"],
        params["acty_w"], params["acty_b"], T, N)
    actions = actions.reshape(B * N, -1)
    return actions, activities


# ---------------------------------------------------------------------------
# Deterministic parameter init (kaiming-normal weights, zero biases, LN affine = identity)
# ---------------------------------------------------------------------------
def init_params(key, cfg, TN):
    K = cfg["crop_size"][0]
    KKD = K * K * cfg["emb_features"]
    NFB = cfg["num_features_boxes"]
    NFG = cfg["num_features_gcn"]
    NFR = cfg["num_features_relation"]
    NG = cfg["num_graph"]

    keys = iter(jax.random.split(key, 64))

    def kaiming(fan_in, fan_out):
        return jax.random.normal(next(keys), (fan_in, fan_out),
                                 jnp.float32) * math.sqrt(2.0 / fan_in)

    params = {
        "emb_w": kaiming(KKD, NFB),
        "emb_b": jnp.zeros((1, NFB), jnp.float32),
        "emb_ln_g": jnp.ones((1, NFB), jnp.float32),
        "emb_ln_b": jnp.zeros((1, NFB), jnp.float32),
        "act_w": kaiming(NFG, cfg["num_actions"]),
        "act_b": jnp.zeros((1, cfg["num_actions"]), jnp.float32),
        "acty_w": kaiming(NFG, cfg["num_activities"]),
        "acty_b": jnp.zeros((1, cfg["num_activities"]), jnp.float32),
        "gcn_layers": [],
    }
    for _ in range(cfg["gcn_layers"]):
        layer = {
            "w_theta": jnp.stack([kaiming(NFG, NFR) for _ in range(NG)]),
            "b_theta": jnp.zeros((NG, 1, NFR), jnp.float32),
            "w_phi": jnp.stack([kaiming(NFG, NFR) for _ in range(NG)]),
            "b_phi": jnp.zeros((NG, 1, NFR), jnp.float32),
            "w_gcn": jnp.stack([kaiming(NFG, NFG) for _ in range(NG)]),
            "ln_g": jnp.ones((NG, TN, NFG), jnp.float32),
            "ln_b": jnp.zeros((NG, TN, NFG), jnp.float32),
        }
        params["gcn_layers"].append(layer)
    # note: fc_gcn_knn_list exists in __init__ but is never used in forward — not materialized.
    return params


# ---------------------------------------------------------------------------
if __name__ == "__main__":
    cfg = dict(
        num_frames=3, num_boxes=8,
        emb_features=16, crop_size=(2, 2),
        num_features_boxes=64, num_features_relation=32, num_features_gcn=64,
        num_graph=2, gcn_layers=1,
        num_actions=9, num_activities=8,
        out_size=(10, 20), pos_threshold=0.2,
        train_dropout_prob=0.0,
    )
    B = 2
    T, N = cfg["num_frames"], cfg["num_boxes"]
    K, D = cfg["crop_size"][0], cfg["emb_features"]
    OH, OW = cfg["out_size"]

    key = jax.random.PRNGKey(0)
    k_feat, k_box, k_par = jax.random.split(key, 3)
    boxes_features_raw = jax.random.normal(k_feat, (B, T, N, K * K * D), jnp.float32)
    boxes_in = jax.random.uniform(k_box, (B, T, N, 4), jnp.float32) * jnp.array(
        [OW, OH, OW, OH], jnp.float32)

    params = init_params(k_par, cfg, T * N)

    fwd = jax.jit(partial(gcnnet_volleyball_forward, cfg=cfg))
    actions_scores, activities_scores = fwd(params, boxes_features_raw, boxes_in)
    jax.block_until_ready(actions_scores)
    jax.block_until_ready(activities_scores)

    assert actions_scores.shape == (B * N, cfg["num_actions"])
    assert activities_scores.shape == (B, cfg["num_activities"])
    assert bool(jnp.isfinite(actions_scores).all())
    assert bool(jnp.isfinite(activities_scores).all())
    print("KERNEL_OK")
</pallas_src>

<mosaic_0001>
module attributes {stable_mosaic.version = 11 : i64} {
  func.func @kernel(%arg0: i32, %arg1: i32, %arg2: memref<1x24x64xbf16, #tpu.memory_space<vmem>>, %arg3: memref<64x64xbf16, #tpu.memory_space<vmem>>, %arg4: memref<1x64xf32, #tpu.memory_space<vmem>>, %arg5: memref<1x64xf32, #tpu.memory_space<vmem>>, %arg6: memref<1x64xf32, #tpu.memory_space<vmem>>, %arg7: memref<1x24x64xf32, #tpu.memory_space<vmem>>, %arg8: memref<24x64xf32, #tpu.memory_space<vmem>>) attributes {dimension_semantics = [#tpu.dimension_semantics<parallel>, #tpu.dimension_semantics<arbitrary>], iteration_bounds = array<i64: 2, 1>, scalar_prefetch = 0 : i64, scratch_operands = 1 : i64, tpu.core_type = #tpu.core_type<tc>, window_params = [{transform_indices = @transform_0, window_bounds = array<i64: 1, 24, 64>}, {transform_indices = @transform_1, window_bounds = array<i64: 64, 64>}, {pipeline_mode = #tpu.pipeline_mode<synchronous>, transform_indices = @transform_2, window_bounds = array<i64: 1, 64>}, {pipeline_mode = #tpu.pipeline_mode<synchronous>, transform_indices = @transform_3, window_bounds = array<i64: 1, 64>}, {pipeline_mode = #tpu.pipeline_mode<synchronous>, transform_indices = @transform_4, window_bounds = array<i64: 1, 64>}, {transform_indices = @transform_5, window_bounds = array<i64: 1, 24, 64>}]} {
    %c0_i32 = arith.constant 0 : i32
    %0 = arith.cmpi eq, %arg1, %c0_i32 : i32
    %1 = arith.extui %0 : i1 to i32
    %c0_i32_0 = arith.constant 0 : i32
    %2 = arith.cmpi ne, %1, %c0_i32_0 : i32
    scf.if %2 {
      %cst_11 = arith.constant 0.000000e+00 : f32
      %13 = vector.broadcast %cst_11 : f32 to vector<24x64xf32>
      %c0_12 = arith.constant 0 : index
      %c0_13 = arith.constant 0 : index
      %14 = vector.load %arg8[%c0_12, %c0_13] : memref<24x64xf32, #tpu.memory_space<vmem>>, vector<24x64xf32>
      tpu.vector_store %arg8[%c0_12, %c0_13], %13 {strides = array<i32>} : memref<24x64xf32, #tpu.memory_space<vmem>>, vector<24x64xf32>,
    } else {
    }
    %c0 = arith.constant 0 : index
    %c0_1 = arith.constant 0 : index
    %c0_2 = arith.constant 0 : index
    %3 = vector.load %arg2[%c0, %c0_1, %c0_2] : memref<1x24x64xbf16, #tpu.memory_space<vmem>>, vector<1x24x64xbf16>
    %4 = vector.shape_cast %3 : vector<1x24x64xbf16> to vector<24x64xbf16>
    %c0_3 = arith.constant 0 : index
    %c0_4 = arith.constant 0 : index
    %5 = vector.load %arg8[%c0_3, %c0_4] : memref<24x64xf32, #tpu.memory_space<vmem>>, vector<24x64xf32>
    %c0_5 = arith.constant 0 : index
    %c0_6 = arith.constant 0 : index
    %6 = vector.load %arg3[%c0_5, %c0_6] : memref<64x64xbf16, #tpu.memory_space<vmem>>, vector<64x64xbf16>
    %cst = arith.constant dense<0.000000e+00> : vector<24x64xf32>
    %7 = tpu.matmul %4, %6, %cst {dimension_numbers = #tpu.dot_dimension_numbers<[1], [0], [0], [1], [0, 0, 1, 1], [], []>} : vector<24x64xbf16>, vector<64x64xbf16>, vector<24x64xf32> -> vector<24x64xf32>
    %8 = arith.addf %5, %7 : vector<24x64xf32>
    %c0_7 = arith.constant 0 : index
    %c0_8 = arith.constant 0 : index
    %9 = vector.load %arg8[%c0_7, %c0_8] : memref<24x64xf32, #tpu.memory_space<vmem>>, vector<24x64xf32>
    tpu.vector_store %arg8[%c0_7, %c0_8], %8 {strides = array<i32>} : memref<24x64xf32, #tpu.memory_space<vmem>>, vector<24x64xf32>,
    %c0_i32_9 = arith.constant 0 : i32
    %10 = arith.cmpi eq, %arg1, %c0_i32_9 : i32
    %11 = arith.extui %10 : i1 to i32
    %c0_i32_10 = arith.constant 0 : i32
    %12 = arith.cmpi ne, %11, %c0_i32_10 : i32
    scf.if %12 {
      %c0_11 = arith.constant 0 : index
      %c0_12 = arith.constant 0 : index
      %13 = vector.load %arg8[%c0_11, %c0_12] : memref<24x64xf32, #tpu.memory_space<vmem>>, vector<24x64xf32>
      %c0_13 = arith.constant 0 : index
      %c0_14 = arith.constant 0 : index
      %14 = vector.load %arg4[%c0_13, %c0_14] : memref<1x64xf32, #tpu.memory_space<vmem>>, vector<1x64xf32>
      %15 = vector.broadcast %14 : vector<1x64xf32> to vector<24x64xf32>
      %16 = arith.addf %13, %15 : vector<24x64xf32>
      %cst_15 = arith.constant dense<0.000000e+00> : vector<24xf32>
      %17 = vector.multi_reduction <add>, %16, %cst_15 [1] : vector<24x64xf32> to vector<24xf32>
      %18 = vector.shape_cast %17 : vector<24xf32> to vector<24x1xf32>
      %cst_16 = arith.constant 6.400000e+01 : f32
      %19 = vector.broadcast %cst_16 : f32 to vector<24x1xf32>
      %20 = arith.divf %18, %19 : vector<24x1xf32>
      %21 = vector.broadcast %20 : vector<24x1xf32> to vector<24x64xf32>
      %22 = arith.subf %16, %21 : vector<24x64xf32>
      %23 = arith.mulf %22, %22 : vector<24x64xf32>
      %cst_17 = arith.constant dense<0.000000e+00> : vector<24xf32>
      %24 = vector.multi_reduction <add>, %23, %cst_17 [1] : vector<24x64xf32> to vector<24xf32>
      %25 = vector.shape_cast %24 : vector<24xf32> to vector<24x1xf32>
      %cst_18 = arith.constant 6.400000e+01 : f32
      %26 = vector.broadcast %cst_18 : f32 to vector<24x1xf32>
      %27 = arith.divf %25, %26 : vector<24x1xf32>
      %28 = vector.broadcast %20 : vector<24x1xf32> to vector<24x64xf32>
      %29 = arith.subf %16, %28 : vector<24x64xf32>
      %cst_19 = arith.constant 9.99999974E-6 : f32
      %30 = vector.broadcast %cst_19 : f32 to vector<24x1xf32>
      %31 = arith.addf %27, %30 : vector<24x1xf32>
      %32 = math.rsqrt %31 : vector<24x1xf32>
      %33 = vector.broadcast %32 : vector<24x1xf32> to vector<24x64xf32>
      %34 = arith.mulf %29, %33 : vector<24x64xf32>
      %c0_20 = arith.constant 0 : index
      %c0_21 = arith.constant 0 : index
      %35 = vector.load %arg5[%c0_20, %c0_21] : memref<1x64xf32, #tpu.memory_space<vmem>>, vector<1x64xf32>
      %36 = vector.broadcast %35 : vector<1x64xf32> to vector<24x64xf32>
      %37 = arith.mulf %34, %36 : vector<24x64xf32>
      %c0_22 = arith.constant 0 : index
      %c0_23 = arith.constant 0 : index
      %38 = vector.load %arg6[%c0_22, %c0_23] : memref<1x64xf32, #tpu.memory_space<vmem>>, vector<1x64xf32>
      %39 = vector.broadcast %38 : vector<1x64xf32> to vector<24x64xf32>
      %40 = arith.addf %37, %39 : vector<24x64xf32>
      %cst_24 = arith.constant 0.000000e+00 : f32
      %41 = vector.broadcast %cst_24 : f32 to vector<24x64xf32>
      %42 = arith.maximumf %40, %41 : vector<24x64xf32>
      %43 = vector.shape_cast %42 : vector<24x64xf32> to vector<3x8x64xf32>
      "tpu.trace_start"() <{level = 10 : i32, message = "tnd,tmd->tnm"}> : () -> ()
      %cst_25 = arith.constant dense<0.000000e+00> : vector<3x8x8xf32>
      %44 = tpu.matmul %43, %43, %cst_25 {dimension_numbers = #tpu.dot_dimension_numbers<[2], [2], [1], [1], [0, 0, 0, 1, 1, 1], [0], [0]>} : vector<3x8x64xf32>, vector<3x8x64xf32>, vector<3x8x8xf32> -> vector<3x8x8xf32>
      "tpu.trace_stop"() : () -> ()
      %45 = tpu.iota {dimensions = array<i32: 1>} : vector<3x8x8xi32>
      %46 = tpu.iota {dimensions = array<i32: 2>} : vector<3x8x8xi32>
      %47 = arith.cmpi eq, %45, %46 : vector<3x8x8xi32>
      %48 = arith.extui %47 : vector<3x8x8xi1> to vector<3x8x8xi32>
      %49 = arith.sitofp %48 : vector<3x8x8xi32> to vector<3x8x8xf32>
      %cst_26 = arith.constant dense<0xFF800000> : vector<3x8xf32>
      %50 = vector.multi_reduction <maximumf>, %44, %cst_26 [2] : vector<3x8x8xf32> to vector<3x8xf32>
      %51 = vector.shape_cast %50 : vector<3x8xf32> to vector<3x8x1xf32>
      %52 = vector.broadcast %51 : vector<3x8x1xf32> to vector<3x8x8xf32>
      %53 = arith.cmpf oge, %44, %52 : vector<3x8x8xf32>
      %c8_i32 = arith.constant 8 : i32
      %54 = vector.broadcast %c8_i32 : i32 to vector<3x8x8xi32>
      %55 = arith.select %53, %46, %54 : vector<3x8x8xi1>, vector<3x8x8xi32>
      %cst_27 = arith.constant dense<2147483647> : vector<3x8xi32>
      %56 = vector.multi_reduction <minsi>, %55, %cst_27 [2] : vector<3x8x8xi32> to vector<3x8xi32>
      %57 = vector.shape_cast %56 : vector<3x8xi32> to vector<3x8x1xi32>
      %58 = vector.broadcast %57 : vector<3x8x1xi32> to vector<3x8x8xi32>
      %59 = arith.cmpi eq, %46, %58 : vector<3x8x8xi32>
      %60 = arith.extui %59 : vector<3x8x8xi1> to vector<3x8x8xi32>
      %61 = arith.sitofp %60 : vector<3x8x8xi32> to vector<3x8x8xf32>
      %62 = arith.addf %49, %61 : vector<3x8x8xf32>
      %cst_28 = arith.constant -1.000000e+30 : f32
      %63 = vector.broadcast %cst_28 : f32 to vector<3x8x8xf32>
      %64 = arith.select %59, %63, %44 : vector<3x8x8xi1>, vector<3x8x8xf32>
      %cst_29 = arith.constant dense<0xFF800000> : vector<3x8xf32>
      %65 = vector.multi_reduction <maximumf>, %64, %cst_29 [2] : vector<3x8x8xf32> to vector<3x8xf32>
      %66 = vector.shape_cast %65 : vector<3x8xf32> to vector<3x8x1xf32>
      %67 = vector.broadcast %66 : vector<3x8x1xf32> to vector<3x8x8xf32>
      %68 = arith.cmpf oge, %64, %67 : vector<3x8x8xf32>
      %c8_i32_30 = arith.constant 8 : i32
      %69 = vector.broadcast %c8_i32_30 : i32 to vector<3x8x8xi32>
      %70 = arith.select %68, %46, %69 : vector<3x8x8xi1>, vector<3x8x8xi32>
      %cst_31 = arith.constant dense<2147483647> : vector<3x8xi32>
      %71 = vector.multi_reduction <minsi>, %70, %cst_31 [2] : vector<3x8x8xi32> to vector<3x8xi32>
      %72 = vector.shape_cast %71 : vector<3x8xi32> to vector<3x8x1xi32>
      %73 = vector.broadcast %72 : vector<3x8x1xi32> to vector<3x8x8xi32>
      %74 = arith.cmpi eq, %46, %73 : vector<3x8x8xi32>
      %75 = arith.extui %74 : vector<3x8x8xi1> to vector<3x8x8xi32>
      %76 = arith.sitofp %75 : vector<3x8x8xi32> to vector<3x8x8xf32>
      %77 = arith.addf %62, %76 : vector<3x8x8xf32>
      %cst_32 = arith.constant -1.000000e+30 : f32
      %78 = vector.broadcast %cst_32 : f32 to vector<3x8x8xf32>
      %79 = arith.select %74, %78, %64 : vector<3x8x8xi1>, vector<3x8x8xf32>
      %cst_33 = arith.constant dense<0xFF800000> : vector<3x8xf32>
      %80 = vector.multi_reduction <maximumf>, %79, %cst_33 [2] : vector<3x8x8xf32> to vector<3x8xf32>
      %81 = vector.shape_cast %80 : vector<3x8xf32> to vector<3x8x1xf32>
      %82 = vector.broadcast %81 : vector<3x8x1xf32> to vector<3x8x8xf32>
      %83 = arith.cmpf oge, %79, %82 : vector<3x8x8xf32>
      %c8_i32_34 = arith.constant 8 : i32
      %84 = vector.broadcast %c8_i32_34 : i32 to vector<3x8x8xi32>
      %85 = arith.select %83, %46, %84 : vector<3x8x8xi1>, vector<3x8x8xi32>
      %cst_35 = arith.constant dense<2147483647> : vector<3x8xi32>
      %86 = vector.multi_reduction <minsi>, %85, %cst_35 [2] : vector<3x8x8xi32> to vector<3x8xi32>
      %87 = vector.shape_cast %86 : vector<3x8xi32> to vector<3x8x1xi32>
      %88 = vector.broadcast %87 : vector<3x8x1xi32> to vector<3x8x8xi32>
      %89 = arith.cmpi eq, %46, %88 : vector<3x8x8xi32>
      %90 = arith.extui %89 : vector<3x8x8xi1> to vector<3x8x8xi32>
      %91 = arith.sitofp %90 : vector<3x8x8xi32> to vector<3x8x8xf32>
      %92 = arith.addf %77, %91 : vector<3x8x8xf32>
      "tpu.trace_start"() <{level = 10 : i32, message = "tnm,tmd->tnd"}> : () -> ()
      %cst_36 = arith.constant dense<0.000000e+00> : vector<3x8x64xf32>
      %93 = tpu.matmul %92, %43, %cst_36 {dimension_numbers = #tpu.dot_dimension_numbers<[2], [1], [1], [2], [0, 0, 0, 1, 1, 2], [0], [0]>} : vector<3x8x8xf32>, vector<3x8x64xf32>, vector<3x8x64xf32> -> vector<3x8x64xf32>
      "tpu.trace_stop"() : () -> ()
      %cst_37 = arith.constant 2.500000e-01 : f32
      %94 = vector.broadcast %cst_37 : f32 to vector<3x8x64xf32>
      %95 = arith.mulf %93, %94 : vector<3x8x64xf32>
      %96 = vector.shape_cast %95 : vector<3x8x64xf32> to vector<1x24x64xf32>
      %c0_38 = arith.constant 0 : index
      %c0_39 = arith.constant 0 : index
      %c0_40 = arith.constant 0 : index
      %97 = vector.load %arg7[%c0_38, %c0_39, %c0_40] : memref<1x24x64xf32, #tpu.memory_space<vmem>>, vector<1x24x64xf32>
      tpu.vector_store %arg7[%c0_38, %c0_39, %c0_40], %96 {strides = array<i32>} : memref<1x24x64xf32, #tpu.memory_space<vmem>>, vector<1x24x64xf32>,
    } else {
    }
    return
  }
  func.func @transform_0(%arg0: i32, %arg1: i32) -> (i32, i32, i32) {
    %c0_i32 = arith.constant 0 : i32
    %c0_i32_0 = arith.constant 0 : i32
    return %arg0, %c0_i32, %arg1 : i32, i32, i32
  }
  func.func @transform_1(%arg0: i32, %arg1: i32) -> (i32, i32) {
    %c0_i32 = arith.constant 0 : i32
    %c0_i32_0 = arith.constant 0 : i32
    return %arg1, %c0_i32 : i32, i32
  }
  func.func @transform_2(%arg0: i32, %arg1: i32) -> (i32, i32) {
    %c0_i32 = arith.constant 0 : i32
    %c0_i32_0 = arith.constant 0 : i32
    %c0_i32_1 = arith.constant 0 : i32
    return %c0_i32, %c0_i32_0 : i32, i32
  }
  func.func @transform_3(%arg0: i32, %arg1: i32) -> (i32, i32) {
    %c0_i32 = arith.constant 0 : i32
    %c0_i32_0 = arith.constant 0 : i32
    %c0_i32_1 = arith.constant 0 : i32
    return %c0_i32, %c0_i32_0 : i32, i32
  }
  func.func @transform_4(%arg0: i32, %arg1: i32) -> (i32, i32) {
    %c0_i32 = arith.constant 0 : i32
    %c0_i32_0 = arith.constant 0 : i32
    %c0_i32_1 = arith.constant 0 : i32
    return %c0_i32, %c0_i32_0 : i32, i32
  }
  func.func @transform_5(%arg0: i32, %arg1: i32) -> (i32, i32, i32) {
    %c0_i32 = arith.constant 0 : i32
    %c0_i32_0 = arith.constant 0 : i32
    %c0_i32_1 = arith.constant 0 : i32
    return %arg0, %c0_i32, %c0_i32_0 : i32, i32, i32
  }
}

module attributes {stable_mosaic.version = 11 : i64} {
  func.func @kernel(%arg0: i32, %arg1: i32, %arg2: memref<1x24x64xf32, #tpu.memory_space<vmem>>, %arg3: memref<1x24x24xf32, #tpu.memory_space<vmem>>, %arg4: memref<1x64x64xbf16, #tpu.memory_space<vmem>>, %arg5: memref<1x1x64xf32, #tpu.memory_space<vmem>>, %arg6: memref<1x64x64xbf16, #tpu.memory_space<vmem>>, %arg7: memref<1x24x64xf32, #tpu.memory_space<vmem>>, %arg8: memref<1x24x64xf32, #tpu.memory_space<vmem>>, %arg9: memref<1x24x64xf32, #tpu.memory_space<vmem>>, %arg10: memref<1x24x128xf32, #tpu.memory_space<vmem>>, %arg11: memref<24x64xf32, #tpu.memory_space<vmem>>) attributes {dimension_semantics = [#tpu.dimension_semantics<parallel>, #tpu.dimension_semantics<arbitrary>], iteration_bounds = array<i64: 2, 2>, scalar_prefetch = 0 : i64, scratch_operands = 1 : i64, tpu.core_type = #tpu.core_type<tc>, window_params = [{transform_indices = @transform_0, window_bounds = array<i64: 1, 24, 64>}, {transform_indices = @transform_1, window_bounds = array<i64: 1, 24, 24>}, {transform_indices = @transform_2, window_bounds = array<i64: 1, 64, 64>}, {transform_indices = @transform_3, window_bounds = array<i64: 1, 1, 64>}, {transform_indices = @transform_4, window_bounds = array<i64: 1, 64, 64>}, {transform_indices = @transform_5, window_bounds = array<i64: 1, 24, 64>}, {transform_indices = @transform_6, window_bounds = array<i64: 1, 24, 64>}, {transform_indices = @transform_7, window_bounds = array<i64: 1, 24, 64>}, {transform_indices = @transform_8, window_bounds = array<i64: 1, 24, 128>}]} {
    %c0_i32 = arith.constant 0 : i32
    %0 = arith.cmpi eq, %arg1, %c0_i32 : i32
    %1 = arith.extui %0 : i1 to i32
    %c0_i32_0 = arith.constant 0 : i32
    %2 = arith.cmpi ne, %1, %c0_i32_0 : i32
    scf.if %2 {
      %cst_40 = arith.constant 0.000000e+00 : f32
      %79 = vector.broadcast %cst_40 : f32 to vector<24x64xf32>
      %c0_41 = arith.constant 0 : index
      %c0_42 = arith.constant 0 : index
      %80 = vector.load %arg11[%c0_41, %c0_42] : memref<24x64xf32, #tpu.memory_space<vmem>>, vector<24x64xf32>
      tpu.vector_store %arg11[%c0_41, %c0_42], %79 {strides = array<i32>} : memref<24x64xf32, #tpu.memory_space<vmem>>, vector<24x64xf32>,
    } else {
    }
    %c0 = arith.constant 0 : index
    %c0_1 = arith.constant 0 : index
    %c0_2 = arith.constant 0 : index
    %3 = vector.load %arg2[%c0, %c0_1, %c0_2] : memref<1x24x64xf32, #tpu.memory_space<vmem>>, vector<1x24x64xf32>
    %4 = vector.shape_cast %3 : vector<1x24x64xf32> to vector<24x64xf32>
    %5 = arith.truncf %4 : vector<24x64xf32> to vector<24x64xbf16>
    %c0_3 = arith.constant 0 : index
    %c0_4 = arith.constant 0 : index
    %c0_5 = arith.constant 0 : index
    %6 = vector.load %arg4[%c0_3, %c0_4, %c0_5] : memref<1x64x64xbf16, #tpu.memory_space<vmem>>, vector<1x64x64xbf16>
    %7 = vector.shape_cast %6 : vector<1x64x64xbf16> to vector<64x64xbf16>
    %cst = arith.constant dense<0.000000e+00> : vector<24x64xf32>
    %8 = tpu.matmul %5, %7, %cst {dimension_numbers = #tpu.dot_dimension_numbers<[1], [0], [0], [1], [0, 0, 1, 1], [], []>} : vector<24x64xbf16>, vector<64x64xbf16>, vector<24x64xf32> -> vector<24x64xf32>
    %c0_6 = arith.constant 0 : index
    %c0_7 = arith.constant 0 : index
    %c0_8 = arith.constant 0 : index
    %9 = vector.load %arg5[%c0_6, %c0_7, %c0_8] : memref<1x1x64xf32, #tpu.memory_space<vmem>>, vector<1x1x64xf32>
    %10 = vector.shape_cast %9 : vector<1x1x64xf32> to vector<1x64xf32>
    %11 = vector.broadcast %10 : vector<1x64xf32> to vector<24x64xf32>
    %12 = arith.addf %8, %11 : vector<24x64xf32>
    %13 = vector.extract_strided_slice %12 {offsets = [0, 0], sizes = [24, 32], strides = [1, 1]} : vector<24x64xf32> to vector<24x32xf32>
    %14 = arith.truncf %13 : vector<24x32xf32> to vector<24x32xbf16>
    %15 = vector.extract_strided_slice %12 {offsets = [0, 32], sizes = [24, 32], strides = [1, 1]} : vector<24x64xf32> to vector<24x32xf32>
    %16 = arith.truncf %15 : vector<24x32xf32> to vector<24x32xbf16>
    %cst_9 = arith.constant dense<0.000000e+00> : vector<24x24xf32>
    %17 = tpu.matmul %14, %16, %cst_9 {dimension_numbers = #tpu.dot_dimension_numbers<[1], [1], [0], [0], [0, 0, 1, 0], [], []>} : vector<24x32xbf16>, vector<24x32xbf16>, vector<24x24xf32> -> vector<24x24xf32>
    %cst_10 = arith.constant 0.176776692 : f32
    %18 = vector.broadcast %cst_10 : f32 to vector<24x24xf32>
    %19 = arith.mulf %17, %18 : vector<24x24xf32>
    %c0_11 = arith.constant 0 : index
    %c0_12 = arith.constant 0 : index
    %c0_13 = arith.constant 0 : index
    %20 = vector.load %arg3[%c0_11, %c0_12, %c0_13] : memref<1x24x24xf32, #tpu.memory_space<vmem>>, vector<1x24x24xf32>
    %21 = vector.shape_cast %20 : vector<1x24x24xf32> to vector<24x24xf32>
    %cst_14 = arith.constant 5.000000e-01 : f32
    %22 = vector.broadcast %cst_14 : f32 to vector<24x24xf32>
    %23 = arith.cmpf ogt, %21, %22 : vector<24x24xf32>
    %cst_15 = arith.constant -1.000000e+30 : f32
    %24 = vector.broadcast %cst_15 : f32 to vector<24x24xf32>
    %25 = arith.select %23, %24, %19 : vector<24x24xi1>, vector<24x24xf32>
    %cst_16 = arith.constant dense<0xFF800000> : vector<24xf32>
    %26 = vector.multi_reduction <maximumf>, %25, %cst_16 [1] : vector<24x24xf32> to vector<24xf32>
    %27 = vector.shape_cast %26 : vector<24xf32> to vector<24x1xf32>
    %28 = vector.broadcast %27 : vector<24x1xf32> to vector<24x24xf32>
    %29 = arith.subf %25, %28 : vector<24x24xf32>
    %30 = math.exp %29 : vector<24x24xf32>
    %cst_17 = arith.constant dense<0.000000e+00> : vector<24xf32>
    %31 = vector.multi_reduction <add>, %30, %cst_17 [1] : vector<24x24xf32> to vector<24xf32>
    %32 = vector.shape_cast %31 : vector<24xf32> to vector<24x1xf32>
    %33 = vector.broadcast %32 : vector<24x1xf32> to vector<24x24xf32>
    %34 = arith.divf %30, %33 : vector<24x24xf32>
    %35 = arith.truncf %34 : vector<24x24xf32> to vector<24x24xbf16>
    %cst_18 = arith.constant dense<0.000000e+00> : vector<24x64xf32>
    %36 = tpu.matmul %35, %5, %cst_18 {dimension_numbers = #tpu.dot_dimension_numbers<[1], [0], [0], [1], [0, 0, 1, 1], [], []>} : vector<24x24xbf16>, vector<24x64xbf16>, vector<24x64xf32> -> vector<24x64xf32>
    %37 = arith.truncf %36 : vector<24x64xf32> to vector<24x64xbf16>
    %c0_19 = arith.constant 0 : index
    %c0_20 = arith.constant 0 : index
    %c0_21 = arith.constant 0 : index
    %38 = vector.load %arg6[%c0_19, %c0_20, %c0_21] : memref<1x64x64xbf16, #tpu.memory_space<vmem>>, vector<1x64x64xbf16>
    %39 = vector.shape_cast %38 : vector<1x64x64xbf16> to vector<64x64xbf16>
    %cst_22 = arith.constant dense<0.000000e+00> : vector<24x64xf32>
    %40 = tpu.matmul %37, %39, %cst_22 {dimension_numbers = #tpu.dot_dimension_numbers<[1], [0], [0], [1], [0, 0, 1, 1], [], []>} : vector<24x64xbf16>, vector<64x64xbf16>, vector<24x64xf32> -> vector<24x64xf32>
    %41 = vector.shape_cast %40 : vector<24x64xf32> to vector<1x24x64xf32>
    %cst_23 = arith.constant dense<0.000000e+00> : vector<1xf32>
    %42 = vector.multi_reduction <add>, %41, %cst_23 [1, 2] : vector<1x24x64xf32> to vector<1xf32>
    %43 = vector.shape_cast %42 : vector<1xf32> to vector<1x1x1xf32>
    %44 = vector.extract %43[0, 0, 0] : f32 from vector<1x1x1xf32>
    %45 = vector.broadcast %44 : f32 to vector<1x1xf32>
    %cst_24 = arith.constant 1.536000e+03 : f32
    %46 = vector.broadcast %cst_24 : f32 to vector<1x1xf32>
    %47 = arith.divf %45, %46 : vector<1x1xf32>
    %48 = vector.broadcast %47 : vector<1x1xf32> to vector<24x64xf32>
    %49 = arith.subf %40, %48 : vector<24x64xf32>
    %50 = arith.mulf %49, %49 : vector<24x64xf32>
    %51 = vector.shape_cast %50 : vector<24x64xf32> to vector<1x24x64xf32>
    %cst_25 = arith.constant dense<0.000000e+00> : vector<1xf32>
    %52 = vector.multi_reduction <add>, %51, %cst_25 [1, 2] : vector<1x24x64xf32> to vector<1xf32>
    %53 = vector.shape_cast %52 : vector<1xf32> to vector<1x1x1xf32>
    %54 = vector.extract %53[0, 0, 0] : f32 from vector<1x1x1xf32>
    %55 = vector.broadcast %54 : f32 to vector<1x1xf32>
    %cst_26 = arith.constant 1.536000e+03 : f32
    %56 = vector.broadcast %cst_26 : f32 to vector<1x1xf32>
    %57 = arith.divf %55, %56 : vector<1x1xf32>
    %58 = vector.broadcast %47 : vector<1x1xf32> to vector<24x64xf32>
    %59 = arith.subf %40, %58 : vector<24x64xf32>
    %cst_27 = arith.constant 9.99999974E-6 : f32
    %60 = vector.broadcast %cst_27 : f32 to vector<1x1xf32>
    %61 = arith.addf %57, %60 : vector<1x1xf32>
    %62 = math.rsqrt %61 : vector<1x1xf32>
    %63 = vector.broadcast %62 : vector<1x1xf32> to vector<24x64xf32>
    %64 = arith.mulf %59, %63 : vector<24x64xf32>
    %c0_28 = arith.constant 0 : index
    %c0_29 = arith.constant 0 : index
    %65 = vector.load %arg11[%c0_28, %c0_29] : memref<24x64xf32, #tpu.memory_space<vmem>>, vector<24x64xf32>
    %c0_30 = arith.constant 0 : index
    %c0_31 = arith.constant 0 : index
    %c0_32 = arith.constant 0 : index
    %66 = vector.load %arg7[%c0_30, %c0_31, %c0_32] : memref<1x24x64xf32, #tpu.memory_space<vmem>>, vector<1x24x64xf32>
    %67 = vector.shape_cast %66 : vector<1x24x64xf32> to vector<24x64xf32>
    %68 = arith.mulf %64, %67 : vector<24x64xf32>
    %c0_33 = arith.constant 0 : index
    %c0_34 = arith.constant 0 : index
    %c0_35 = arith.constant 0 : index
    %69 = vector.load %arg8[%c0_33, %c0_34, %c0_35] : memref<1x24x64xf32, #tpu.memory_space<vmem>>, vector<1x24x64xf32>
    %70 = vector.shape_cast %69 : vector<1x24x64xf32> to vector<24x64xf32>
    %71 = arith.addf %68, %70 : vector<24x64xf32>
    %cst_36 = arith.constant 0.000000e+00 : f32
    %72 = vector.broadcast %cst_36 : f32 to vector<24x64xf32>
    %73 = arith.maximumf %71, %72 : vector<24x64xf32>
    %74 = arith.addf %65, %73 : vector<24x64xf32>
    %c0_37 = arith.constant 0 : index
    %c0_38 = arith.constant 0 : index
    %75 = vector.load %arg11[%c0_37, %c0_38] : memref<24x64xf32, #tpu.memory_space<vmem>>, vector<24x64xf32>
    tpu.vector_store %arg11[%c0_37, %c0_38], %74 {strides = array<i32>} : memref<24x64xf32, #tpu.memory_space<vmem>>, vector<24x64xf32>,
    %c1_i32 = arith.constant 1 : i32
    %76 = arith.cmpi eq, %arg1, %c1_i32 : i32
    %77 = arith.extui %76 : i1 to i32
    %c0_i32_39 = arith.constant 0 : i32
    %78 = arith.cmpi ne, %77, %c0_i32_39 : i32
    scf.if %78 {
      %c0_40 = arith.constant 0 : index
      %c0_41 = arith.constant 0 : index
      %79 = vector.load %arg11[%c0_40, %c0_41] : memref<24x64xf32, #tpu.memory_space<vmem>>, vector<24x64xf32>
      %c0_42 = arith.constant 0 : index
      %c0_43 = arith.constant 0 : index
      %c0_44 = arith.constant 0 : index
      %80 = vector.load %arg9[%c0_42, %c0_43, %c0_44] : memref<1x24x64xf32, #tpu.memory_space<vmem>>, vector<1x24x64xf32>
      %81 = vector.shape_cast %80 : vector<1x24x64xf32> to vector<24x64xf32>
      %82 = vector.shape_cast %79 : vector<24x64xf32> to vector<1x24x64xf32>
      tpu.vector_store %arg9[%c0_42, %c0_43, %c0_44], %82 {strides = array<i32>} : memref<1x24x64xf32, #tpu.memory_space<vmem>>, vector<1x24x64xf32>,
      %c0_i32_45 = arith.constant 0 : i32
      %83 = arith.sitofp %c0_i32_45 : i32 to f32
      %84 = vector.broadcast %83 : f32 to vector<24x104xf32>
      %85 = tpu.concatenate %34, %84 in 1 : vector<24x24xf32>, vector<24x104xf32> -> vector<24x128xf32>
      %c0_46 = arith.constant 0 : index
      %c0_47 = arith.constant 0 : index
      %c0_48 = arith.constant 0 : index
      %86 = vector.load %arg10[%c0_46, %c0_47, %c0_48] : memref<1x24x128xf32, #tpu.memory_space<vmem>>, vector<1x24x128xf32>
      %87 = vector.shape_cast %86 : vector<1x24x128xf32> to vector<24x128xf32>
      %88 = vector.shape_cast %85 : vector<24x128xf32> to vector<1x24x128xf32>
      tpu.vector_store %arg10[%c0_46, %c0_47, %c0_48], %88 {strides = array<i32>} : memref<1x24x128xf32, #tpu.memory_space<vmem>>, vector<1x24x128xf32>,
    } else {
    }
    return
  }
  func.func @transform_0(%arg0: i32, %arg1: i32) -> (i32, i32, i32) {
    %c0_i32 = arith.constant 0 : i32
    %c0_i32_0 = arith.constant 0 : i32
    %c0_i32_1 = arith.constant 0 : i32
    return %arg0, %c0_i32, %c0_i32_0 : i32, i32, i32
  }
  func.func @transform_1(%arg0: i32, %arg1: i32) -> (i32, i32, i32) {
    %c0_i32 = arith.constant 0 : i32
    %c0_i32_0 = arith.constant 0 : i32
    %c0_i32_1 = arith.constant 0 : i32
    return %arg0, %c0_i32, %c0_i32_0 : i32, i32, i32
  }
  func.func @transform_2(%arg0: i32, %arg1: i32) -> (i32, i32, i32) {
    %c0_i32 = arith.constant 0 : i32
    %c0_i32_0 = arith.constant 0 : i32
    %c0_i32_1 = arith.constant 0 : i32
    return %arg1, %c0_i32, %c0_i32_0 : i32, i32, i32
  }
  func.func @transform_3(%arg0: i32, %arg1: i32) -> (i32, i32, i32) {
    %c0_i32 = arith.constant 0 : i32
    %c0_i32_0 = arith.constant 0 : i32
    %c0_i32_1 = arith.constant 0 : i32
    return %arg1, %c0_i32, %c0_i32_0 : i32, i32, i32
  }
  func.func @transform_4(%arg0: i32, %arg1: i32) -> (i32, i32, i32) {
    %c0_i32 = arith.constant 0 : i32
    %c0_i32_0 = arith.constant 0 : i32
    %c0_i32_1 = arith.constant 0 : i32
    return %arg1, %c0_i32, %c0_i32_0 : i32, i32, i32
  }
  func.func @transform_5(%arg0: i32, %arg1: i32) -> (i32, i32, i32) {
    %c0_i32 = arith.constant 0 : i32
    %c0_i32_0 = arith.constant 0 : i32
    %c0_i32_1 = arith.constant 0 : i32
    return %arg1, %c0_i32, %c0_i32_0 : i32, i32, i32
  }
  func.func @transform_6(%arg0: i32, %arg1: i32) -> (i32, i32, i32) {
    %c0_i32 = arith.constant 0 : i32
    %c0_i32_0 = arith.constant 0 : i32
    %c0_i32_1 = arith.constant 0 : i32
    return %arg1, %c0_i32, %c0_i32_0 : i32, i32, i32
  }
  func.func @transform_7(%arg0: i32, %arg1: i32) -> (i32, i32, i32) {
    %c0_i32 = arith.constant 0 : i32
    %c0_i32_0 = arith.constant 0 : i32
    %c0_i32_1 = arith.constant 0 : i32
    return %arg0, %c0_i32, %c0_i32_0 : i32, i32, i32
  }
  func.func @transform_8(%arg0: i32, %arg1: i32) -> (i32, i32, i32) {
    %c0_i32 = arith.constant 0 : i32
    %c0_i32_0 = arith.constant 0 : i32
    %c0_i32_1 = arith.constant 0 : i32
    return %arg0, %c0_i32, %c0_i32_0 : i32, i32, i32
  }
}

module attributes {stable_mosaic.version = 11 : i64} {
  func.func @kernel(%arg0: i32, %arg1: memref<1x24x64xf32, #tpu.memory_space<vmem>>, %arg2: memref<64x128xbf16, #tpu.memory_space<vmem>>, %arg3: memref<1x128xf32, #tpu.memory_space<vmem>>, %arg4: memref<64x128xbf16, #tpu.memory_space<vmem>>, %arg5: memref<1x128xf32, #tpu.memory_space<vmem>>, %arg6: memref<1x8x128xf32, #tpu.memory_space<vmem>>, %arg7: memref<1x1x128xf32, #tpu.memory_space<vmem>>) attributes {dimension_semantics = [#tpu.dimension_semantics<parallel>], iteration_bounds = array<i64: 2>, scalar_prefetch = 0 : i64, scratch_operands = 0 : i64, tpu.core_type = #tpu.core_type<tc>, window_params = [{transform_indices = @transform_0, window_bounds = array<i64: 1, 24, 64>}, {pipeline_mode = #tpu.pipeline_mode<synchronous>, transform_indices = @transform_1, window_bounds = array<i64: 64, 128>}, {pipeline_mode = #tpu.pipeline_mode<synchronous>, transform_indices = @transform_2, window_bounds = array<i64: 1, 128>}, {pipeline_mode = #tpu.pipeline_mode<synchronous>, transform_indices = @transform_3, window_bounds = array<i64: 64, 128>}, {pipeline_mode = #tpu.pipeline_mode<synchronous>, transform_indices = @transform_4, window_bounds = array<i64: 1, 128>}, {transform_indices = @transform_5, window_bounds = array<i64: 1, 8, 128>}, {transform_indices = @transform_6, window_bounds = array<i64: 1, 1, 128>}]} {
    %c0 = arith.constant 0 : index
    %c0_0 = arith.constant 0 : index
    %c0_1 = arith.constant 0 : index
    %0 = vector.load %arg1[%c0, %c0_0, %c0_1] : memref<1x24x64xf32, #tpu.memory_space<vmem>>, vector<1x24x64xf32>
    %1 = vector.shape_cast %0 : vector<1x24x64xf32> to vector<24x64xf32>
    %2 = arith.truncf %1 : vector<24x64xf32> to vector<24x64xbf16>
    %c0_2 = arith.constant 0 : index
    %c0_3 = arith.constant 0 : index
    %3 = vector.load %arg2[%c0_2, %c0_3] : memref<64x128xbf16, #tpu.memory_space<vmem>>, vector<64x128xbf16>
    %cst = arith.constant dense<0.000000e+00> : vector<24x128xf32>
    %4 = tpu.matmul %2, %3, %cst {dimension_numbers = #tpu.dot_dimension_numbers<[1], [0], [0], [1], [0, 0, 1, 1], [], []>} : vector<24x64xbf16>, vector<64x128xbf16>, vector<24x128xf32> -> vector<24x128xf32>
    %c0_4 = arith.constant 0 : index
    %c0_5 = arith.constant 0 : index
    %5 = vector.load %arg3[%c0_4, %c0_5] : memref<1x128xf32, #tpu.memory_space<vmem>>, vector<1x128xf32>
    %6 = vector.broadcast %5 : vector<1x128xf32> to vector<24x128xf32>
    %7 = arith.addf %4, %6 : vector<24x128xf32>
    %8 = vector.shape_cast %7 : vector<24x128xf32> to vector<3x8x128xf32>
    %cst_6 = arith.constant dense<0.000000e+00> : vector<8x128xf32>
    %9 = vector.multi_reduction <add>, %8, %cst_6 [0] : vector<3x8x128xf32> to vector<8x128xf32>
    %cst_7 = arith.constant 3.000000e+00 : f32
    %10 = vector.broadcast %cst_7 : f32 to vector<8x128xf32>
    %11 = arith.divf %9, %10 : vector<8x128xf32>
    %c0_8 = arith.constant 0 : index
    %c0_9 = arith.constant 0 : index
    %c0_10 = arith.constant 0 : index
    %12 = vector.load %arg6[%c0_8, %c0_9, %c0_10] : memref<1x8x128xf32, #tpu.memory_space<vmem>>, vector<1x8x128xf32>
    %13 = vector.shape_cast %12 : vector<1x8x128xf32> to vector<8x128xf32>
    %14 = vector.shape_cast %11 : vector<8x128xf32> to vector<1x8x128xf32>
    tpu.vector_store %arg6[%c0_8, %c0_9, %c0_10], %14 {strides = array<i32>} : memref<1x8x128xf32, #tpu.memory_space<vmem>>, vector<1x8x128xf32>,
    %15 = vector.shape_cast %1 : vector<24x64xf32> to vector<3x8x64xf32>
    %cst_11 = arith.constant dense<0xFF800000> : vector<3x64xf32>
    %16 = vector.multi_reduction <maximumf>, %15, %cst_11 [1] : vector<3x8x64xf32> to vector<3x64xf32>
    %17 = arith.truncf %16 : vector<3x64xf32> to vector<3x64xbf16>
    %c0_12 = arith.constant 0 : index
    %c0_13 = arith.constant 0 : index
    %18 = vector.load %arg4[%c0_12, %c0_13] : memref<64x128xbf16, #tpu.memory_space<vmem>>, vector<64x128xbf16>
    %cst_14 = arith.constant dense<0.000000e+00> : vector<3x128xf32>
    %19 = tpu.matmul %17, %18, %cst_14 {dimension_numbers = #tpu.dot_dimension_numbers<[1], [0], [0], [1], [0, 0, 1, 1], [], []>} : vector<3x64xbf16>, vector<64x128xbf16>, vector<3x128xf32> -> vector<3x128xf32>
    %c0_15 = arith.constant 0 : index
    %c0_16 = arith.constant 0 : index
    %20 = vector.load %arg5[%c0_15, %c0_16] : memref<1x128xf32, #tpu.memory_space<vmem>>, vector<1x128xf32>
    %21 = vector.broadcast %20 : vector<1x128xf32> to vector<3x128xf32>
    %22 = arith.addf %19, %21 : vector<3x128xf32>
    %cst_17 = arith.constant dense<0.000000e+00> : vector<128xf32>
    %23 = vector.multi_reduction <add>, %22, %cst_17 [0] : vector<3x128xf32> to vector<128xf32>
    %24 = vector.shape_cast %23 : vector<128xf32> to vector<1x128xf32>
    %cst_18 = arith.constant 3.000000e+00 : f32
    %25 = vector.broadcast %cst_18 : f32 to vector<1x128xf32>
    %26 = arith.divf %24, %25 : vector<1x128xf32>
    %c0_19 = arith.constant 0 : index
    %c0_20 = arith.constant 0 : index
    %c0_21 = arith.constant 0 : index
    %27 = vector.load %arg7[%c0_19, %c0_20, %c0_21] : memref<1x1x128xf32, #tpu.memory_space<vmem>>, vector<1x1x128xf32>
    %28 = vector.shape_cast %27 : vector<1x1x128xf32> to vector<1x128xf32>
    %29 = vector.shape_cast %26 : vector<1x128xf32> to vector<1x1x128xf32>
    tpu.vector_store %arg7[%c0_19, %c0_20, %c0_21], %29 {strides = array<i32>} : memref<1x1x128xf32, #tpu.memory_space<vmem>>, vector<1x1x128xf32>,
    return
  }
  func.func @transform_0(%arg0: i32) -> (i32, i32, i32) {
    %c0_i32 = arith.constant 0 : i32
    %c0_i32_0 = arith.constant 0 : i32
    %c0_i32_1 = arith.constant 0 : i32
    return %arg0, %c0_i32, %c0_i32_0 : i32, i32, i32
  }
  func.func @transform_1(%arg0: i32) -> (i32, i32) {
    %c0_i32 = arith.constant 0 : i32
    %c0_i32_0 = arith.constant 0 : i32
    %c0_i32_1 = arith.constant 0 : i32
    return %c0_i32, %c0_i32_0 : i32, i32
  }
  func.func @transform_2(%arg0: i32) -> (i32, i32) {
    %c0_i32 = arith.constant 0 : i32
    %c0_i32_0 = arith.constant 0 : i32
    %c0_i32_1 = arith.constant 0 : i32
    return %c0_i32, %c0_i32_0 : i32, i32
  }
  func.func @transform_3(%arg0: i32) -> (i32, i32) {
    %c0_i32 = arith.constant 0 : i32
    %c0_i32_0 = arith.constant 0 : i32
    %c0_i32_1 = arith.constant 0 : i32
    return %c0_i32, %c0_i32_0 : i32, i32
  }
  func.func @transform_4(%arg0: i32) -> (i32, i32) {
    %c0_i32 = arith.constant 0 : i32
    %c0_i32_0 = arith.constant 0 : i32
    %c0_i32_1 = arith.constant 0 : i32
    return %c0_i32, %c0_i32_0 : i32, i32
  }
  func.func @transform_5(%arg0: i32) -> (i32, i32, i32) {
    %c0_i32 = arith.constant 0 : i32
    %c0_i32_0 = arith.constant 0 : i32
    %c0_i32_1 = arith.constant 0 : i32
    return %arg0, %c0_i32, %c0_i32_0 : i32, i32, i32
  }
  func.func @transform_6(%arg0: i32) -> (i32, i32, i32) {
    %c0_i32 = arith.constant 0 : i32
    %c0_i32_0 = arith.constant 0 : i32
    %c0_i32_1 = arith.constant 0 : i32
    return %arg0, %c0_i32, %c0_i32_0 : i32, i32, i32
  }
}

</mosaic_0001>

<llo_original>
// kernel: gcnnet_volleyball_forward.5
$region0: #{gcnnet_volleyball_forward.5}
  #allocation0 [shape = 'u32[]', space=smem, size = 0x4, offset = 0x4, fixed_abs, tag = 'smem constant byte address 0x4 - core index']
  #allocation1 [shape = 'u32[72,128]{1,0:T(1,128)}', space=vmem, size = 0x9000, scoped, tag = 'internal scratch']
  %s0 = inlined_call_operand.vmem [shape: f32[2,24,64], index: 0, kind: input, shape index: {}]
  %s1 = inlined_call_operand.vmem [shape: bf16[64,128], index: 1, kind: input, shape index: {}]
  %s2 = inlined_call_operand.vmem [shape: f32[1,128], index: 2, kind: input, shape index: {}]
  %s3 = inlined_call_operand.vmem [shape: bf16[64,128], index: 3, kind: input, shape index: {}]
  %s4 = inlined_call_operand.vmem [shape: f32[1,128], index: 4, kind: input, shape index: {}]
  %s5 = inlined_call_operand.vmem [shape: f32[2,8,128], index: 5, kind: output, shape index: {0}]
  %s6 = inlined_call_operand.hbm [shape: f32[2,1,128], index: 6, kind: output, shape index: {1}]
  %7 = xla_tuple %s5, %s6
  %s8 = sld [smem:[#allocation0]]
  $region61: #{gcnnet_volleyball_forward.5} parent=0
    _
  %s10 = ssub.s32 1, %s8
  %s11 = scalar_select 0, %s10, %s8
  $region1: #{gcnnet_volleyball_forward.5} parent=0
    #allocation2 [shape = 'u8[1024]{0}', space=vmem, size = 0x400, scoped, tag = 'output window, operand 1']
    #allocation3 [shape = 's32[2]{0}', space=sflag, size = 0x8, scoped, tag = 'scoped memory for gcnnet_volleyball_forward.5']
    %12 = vsyncpa [#allocation3], 0
    %s13 = scalar_lea.sflag [#allocation3], 1
    %14 = vsyncpa %s13, 0
    loop: start=0, step=1, limit=4
    $region2: #{gcnnet_volleyball_forward.5} parent=1 // loop_pre_header
      _
    $region3: #{gcnnet_volleyball_forward.5} parent=1 // loop_header
      %s16 = sphi 0, %s20
      %p17 = scmp.ge.s32.totalorder %s16, 4
      %s26 = sphi 0, %s28
      %s29 = sphi 0, %s26
      %s30 = sphi 0, %s29
      %s46 = sphi 0, %s30
      %s50 = sphi 0, %s50
      %s52 = sphi 0, %s50
      %s53 = sphi 0, %s52
      %s67 = sphi 0, %s53
      %s71 = sphi 0, %s71
      %s73 = sphi 0, %s71
      %s74 = sphi 0, %s73
      %s88 = sphi 0, %s74
      %s92 = sphi 0, %s92
      %s94 = sphi 0, %s92
      %s95 = sphi 0, %s94
      %s109 = sphi 0, %s95
      %s113 = sphi 0, %s113
      %s115 = sphi 0, %s113
      %s116 = sphi 0, %s115
      %s130 = sphi 0, %s116
      %s136 = sphi 0, %s138
      %s139 = sphi 0, %s136
      %s140 = sphi 0, %s139
      %s156 = sphi 0, %s140
      %s162 = sphi 0, %s164
      %s165 = sphi 0, %s162
      %s166 = sphi 0, %s165
      %s182 = sphi 0, %s166
    $region4: #{gcnnet_volleyball_forward.5} parent=1 // loop_header_branch
      %19 = sbr.rel (%p17) target = $region8
    $region5: #{gcnnet_volleyball_forward.5} parent=1 // loop_body
      %s21 = ssub.s32 %s16, 1
      %s22 = ssub.s32 %s16, 2
      %s23 = sadd.s32 %s16, 1
      %s24 = ssub.s32 %s16, %s23
      %p25 = scmp.eq.s32.totalorder %s24, 0
      %s27 = sadd.s32 %s26, 1
      %s28 = scalar_select %p25, %s26, %s27
      %p31 = pneg %p25
      %p32 = scmp.eq.s32.totalorder %s16, 1
      %p33 = por %p31, %p32
      %p34 = scmp.ne.s32.totalorder %s26, %s29
      %p35 = scmp.eq.s32.totalorder %s16, 0
      %p36 = por %p34, %p35
      %p37 = scmp.ne.s32.totalorder %s26, %s29
      %p38 = scmp.eq.s32.totalorder %s21, 1
      %p39 = por %p37, %p38
      %p40 = scmp.ne.s32.totalorder %s29, %s30
      %p41 = scmp.eq.s32.totalorder %s21, 0
      %p42 = por %p40, %p41
      %p43 = scmp.ne.s32.totalorder %s29, %s30
      %p44 = scmp.eq.s32.totalorder %s22, 1
      %p45 = por %p43, %p44
      %p47 = scmp.ne.s32.totalorder %s30, %s46
      %p48 = scmp.eq.s32.totalorder %s22, 0
      %p49 = por %p47, %p48
      %s51 = sadd.s32 %s50, 1
      %p54 = scmp.eq.s32.totalorder %s16, 1
      %p55 = scmp.ne.s32.totalorder %s50, %s52
      %p56 = scmp.eq.s32.totalorder %s16, 0
      %p57 = por %p55, %p56
      %p58 = scmp.ne.s32.totalorder %s50, %s52
      %p59 = scmp.eq.s32.totalorder %s21, 1
      %p60 = por %p58, %p59
      %p61 = scmp.ne.s32.totalorder %s52, %s53
      %p62 = scmp.eq.s32.totalorder %s21, 0
      %p63 = por %p61, %p62
      %p64 = scmp.ne.s32.totalorder %s52, %s53
      %p65 = scmp.eq.s32.totalorder %s22, 1
      %p66 = por %p64, %p65
      %p68 = scmp.ne.s32.totalorder %s53, %s67
      %p69 = scmp.eq.s32.totalorder %s22, 0
      %p70 = por %p68, %p69
      %s72 = sadd.s32 %s71, 1
      %p75 = scmp.eq.s32.totalorder %s16, 1
      %p76 = scmp.ne.s32.totalorder %s71, %s73
      %p77 = scmp.eq.s32.totalorder %s16, 0
      %p78 = por %p76, %p77
      %p79 = scmp.ne.s32.totalorder %s71, %s73
      %p80 = scmp.eq.s32.totalorder %s21, 1
      %p81 = por %p79, %p80
      %p82 = scmp.ne.s32.totalorder %s73, %s74
      %p83 = scmp.eq.s32.totalorder %s21, 0
      %p84 = por %p82, %p83
      %p85 = scmp.ne.s32.totalorder %s73, %s74
      %p86 = scmp.eq.s32.totalorder %s22, 1
      %p87 = por %p85, %p86
      %p89 = scmp.ne.s32.totalorder %s74, %s88
      %p90 = scmp.eq.s32.totalorder %s22, 0
      %p91 = por %p89, %p90
      %s93 = sadd.s32 %s92, 1
      %p96 = scmp.eq.s32.totalorder %s16, 1
      %p97 = scmp.ne.s32.totalorder %s92, %s94
      %p98 = scmp.eq.s32.totalorder %s16, 0
      %p99 = por %p97, %p98
      %p100 = scmp.ne.s32.totalorder %s92, %s94
      %p101 = scmp.eq.s32.totalorder %s21, 1
      %p102 = por %p100, %p101
      %p103 = scmp.ne.s32.totalorder %s94, %s95
      %p104 = scmp.eq.s32.totalorder %s21, 0
      %p105 = por %p103, %p104
      %p106 = scmp.ne.s32.totalorder %s94, %s95
      %p107 = scmp.eq.s32.totalorder %s22, 1
      %p108 = por %p106, %p107
      %p110 = scmp.ne.s32.totalorder %s95, %s109
      %p111 = scmp.eq.s32.totalorder %s22, 0
      %p112 = por %p110, %p111
      %s114 = sadd.s32 %s113, 1
      %p117 = scmp.eq.s32.totalorder %s16, 1
      %p118 = scmp.ne.s32.totalorder %s113, %s115
      %p119 = scmp.eq.s32.totalorder %s16, 0
      %p120 = por %p118, %p119
      %p121 = scmp.ne.s32.totalorder %s113, %s115
      %p122 = scmp.eq.s32.totalorder %s21, 1
      %p123 = por %p121, %p122
      %p124 = scmp.ne.s32.totalorder %s115, %s116
      %p125 = scmp.eq.s32.totalorder %s21, 0
      %p126 = por %p124, %p125
      %p127 = scmp.ne.s32.totalorder %s115, %s116
      %p128 = scmp.eq.s32.totalorder %s22, 1
      %p129 = por %p127, %p128
      %p131 = scmp.ne.s32.totalorder %s116, %s130
      %p132 = scmp.eq.s32.totalorder %s22, 0
      %p133 = por %p131, %p132
      %s134 = ssub.s32 %s16, %s23
      %p135 = scmp.eq.s32.totalorder %s134, 0
      %s137 = sadd.s32 %s136, 1
      %s138 = scalar_select %p135, %s136, %s137
      %p141 = pneg %p135
      %p142 = scmp.eq.s32.totalorder %s16, 1
      %p143 = por %p141, %p142
      %p144 = scmp.ne.s32.totalorder %s136, %s139
      %p145 = scmp.eq.s32.totalorder %s16, 0
      %p146 = por %p144, %p145
      %p147 = scmp.ne.s32.totalorder %s136, %s139
      %p148 = scmp.eq.s32.totalorder %s21, 1
      %p149 = por %p147, %p148
      %p150 = scmp.ne.s32.totalorder %s139, %s140
      %p151 = scmp.eq.s32.totalorder %s21, 0
      %p152 = por %p150, %p151
      %p153 = scmp.ne.s32.totalorder %s139, %s140
      %p154 = scmp.eq.s32.totalorder %s22, 1
      %p155 = por %p153, %p154
      %p157 = scmp.ne.s32.totalorder %s140, %s156
      %p158 = scmp.eq.s32.totalorder %s22, 0
      %p159 = por %p157, %p158
      %s160 = ssub.s32 %s16, %s23
      %p161 = scmp.eq.s32.totalorder %s160, 0
      %s163 = sadd.s32 %s162, 1
      %s164 = scalar_select %p161, %s162, %s163
      %p167 = pneg %p161
      %p168 = scmp.eq.s32.totalorder %s16, 1
      %p169 = por %p167, %p168
      %p170 = scmp.ne.s32.totalorder %s162, %s165
      %p171 = scmp.eq.s32.totalorder %s16, 0
      %p172 = por %p170, %p171
      %p173 = scmp.ne.s32.totalorder %s162, %s165
      %p174 = scmp.eq.s32.totalorder %s21, 1
      %p175 = por %p173, %p174
      %p176 = scmp.ne.s32.totalorder %s165, %s166
      %p177 = scmp.eq.s32.totalorder %s21, 0
      %p178 = por %p176, %p177
      %p179 = scmp.ne.s32.totalorder %s165, %s166
      %p180 = scmp.eq.s32.totalorder %s22, 1
      %p181 = por %p179, %p180
      %p183 = scmp.ne.s32.totalorder %s166, %s182
      %p184 = scmp.eq.s32.totalorder %s22, 0
      %p185 = por %p183, %p184
      %p186 = scmp.le.s32.totalorder 1, %s16
      %p187 = scmp.lt.s32.totalorder %s16, 3
      %p188 = pnand %p186, %p187
      %p189 = pneg %p188
      // Predicated region
      $region9: #{gcnnet_volleyball_forward.5} parent=5 // pred_check
        _
      $region10: #{gcnnet_volleyball_forward.5} parent=5 // pred_check_branch
        %191 = sbr.rel (%p188) target = $region12
      $region11: #{gcnnet_volleyball_forward.5} parent=5 // pred_region
        %s192 = ssub.s32 %s16, 1
        // Predicated region
        $region13: #{gcnnet_volleyball_forward.5} parent=11 // pred_check
          %p193 = pneg %p63
        $region14: #{gcnnet_volleyball_forward.5} parent=11 // pred_check_branch
          %195 = sbr.rel (%p193) target = $region16
        $region15: #{gcnnet_volleyball_forward.5} parent=11 // pred_region
          _
        $region16: #{gcnnet_volleyball_forward.5} parent=11 // pred_fallthru
          _
        // Predicated region
        $region17: #{gcnnet_volleyball_forward.5} parent=11 // pred_check
          %p196 = pneg %p84
        $region18: #{gcnnet_volleyball_forward.5} parent=11 // pred_check_branch
          %198 = sbr.rel (%p196) target = $region20
        $region19: #{gcnnet_volleyball_forward.5} parent=11 // pred_region
          _
        $region20: #{gcnnet_volleyball_forward.5} parent=11 // pred_fallthru
          _
        // Predicated region
        $region21: #{gcnnet_volleyball_forward.5} parent=11 // pred_check
          %p199 = pneg %p105
        $region22: #{gcnnet_volleyball_forward.5} parent=11 // pred_check_branch
          %201 = sbr.rel (%p199) target = $region24
        $region23: #{gcnnet_volleyball_forward.5} parent=11 // pred_region
          _
        $region24: #{gcnnet_volleyball_forward.5} parent=11 // pred_fallthru
          _
        // Predicated region
        $region25: #{gcnnet_volleyball_forward.5} parent=11 // pred_check
          %p202 = pneg %p126
        $region26: #{gcnnet_volleyball_forward.5} parent=11 // pred_check_branch
          %204 = sbr.rel (%p202) target = $region28
        $region27: #{gcnnet_volleyball_forward.5} parent=11 // pred_region
          _
        $region28: #{gcnnet_volleyball_forward.5} parent=11 // pred_fallthru
          _
      $region12: #{gcnnet_volleyball_forward.5} parent=5 // pred_fallthru
        _
      %p205 = scmp.lt.s32.totalorder %s16, 2
      // Predicated region
      $region29: #{gcnnet_volleyball_forward.5} parent=5 // pred_check
        %p206 = pneg %p205
      $region30: #{gcnnet_volleyball_forward.5} parent=5 // pred_check_branch
        %208 = sbr.rel (%p206) target = $region32
      $region31: #{gcnnet_volleyball_forward.5} parent=5 // pred_region
        // Predicated region
        $region33: #{gcnnet_volleyball_forward.5} parent=31 // pred_check
          %p209 = pneg %p36
        $region34: #{gcnnet_volleyball_forward.5} parent=31 // pred_check_branch
          %211 = sbr.rel (%p209) target = $region36
        $region35: #{gcnnet_volleyball_forward.5} parent=31 // pred_region
          %p212 = scmp.lt.s32.totalorder %s16, 1
          %s213 = scalar_select %p212, %s16, 1
          %s214 = smul.addr %s213, 3
          %s215 = smul.addr %s214, 8
          %s216 = scalar_lea.vmem %s0, %s215
        $region36: #{gcnnet_volleyball_forward.5} parent=31 // pred_fallthru
          _
      $region32: #{gcnnet_volleyball_forward.5} parent=5 // pred_fallthru
        _
      %p217 = scmp.le.s32.totalorder 1, %s16
      %p218 = scmp.lt.s32.totalorder %s16, 3
      %p219 = pnand %p217, %p218
      %p220 = pneg %p219
      // Predicated region
      $region37: #{gcnnet_volleyball_forward.5} parent=5 // pred_check
        _
      $region38: #{gcnnet_volleyball_forward.5} parent=5 // pred_check_branch
        %222 = sbr.rel (%p219) target = $region40
      $region39: #{gcnnet_volleyball_forward.5} parent=5 // pred_region
        %s223 = ssub.s32 %s16, 1
        %p224 = scmp.lt.s32.totalorder %s21, 1
        %s225 = scalar_select %p224, %s21, 1
        %s226 = smul.addr %s225, 3
        %s227 = smul.addr %s226, 8
        %s228 = scalar_lea.vmem %s0, %s227
        %p229 = pneg %p42
        %p230 = pneg %p39
        %p231 = pneg %p63
        %p232 = pneg %p60
        %p233 = pneg %p84
        %p234 = pneg %p81
        %p235 = pneg %p105
        %p236 = pneg %p102
        %p237 = pneg %p126
        %p238 = pneg %p123
        %p239 = pneg %p152
        %p240 = pneg %p149
        %p241 = scmp.lt.s32.totalorder %s21, 1
        %s242 = scalar_select %p241, %s21, 1
        %s243 = smul.addr %s242, 8
        %s244 = scalar_lea.vmem %s5, %s243
        %p245 = pneg %p178
        %p246 = pneg %p175
        %s247 = sand.u32 %s165, 1
        %s248 = scalar_lea.sflag [#allocation3], %s247
        %s249 = sand.u32 %s165, 1
        %s250 = scalar_lea.vmem [#allocation2], %s249
        %p251 = scmp.lt.s32.totalorder %s21, 1
        %s252 = scalar_select %p251, %s21, 1
        %s253 = smul.addr %s252, 3
        %s254 = smul.addr %s253, 8
        %s255 = scalar_lea.vmem %s0, %s254
        %p256 = scmp.lt.s32.totalorder %s21, 1
        %s257 = scalar_select %p256, %s21, 1
        %s258 = smul.addr %s257, 8
        %s259 = scalar_lea.vmem %s5, %s258
        %v261 = vld [vmem:[%s255] sm:$0xff]
        %v262 = vld [vmem:[%s255 + $0x8] sm:$0xff]
        %v263 = vld [vmem:[%s255 + $0x10] sm:$0xff]
        %v264 = vpack.c.bf16 %v262, %v261
        %v265 = vpack.c.bf16 %v263, %v263
        %v266 = vld [vmem:[%s1] sm:$0xf]
        %v267 = vld [vmem:[%s1 + $0x4] sm:$0xf]
        %v268 = vld [vmem:[%s1 + $0x8] sm:$0xf]
        %v269 = vld [vmem:[%s1 + $0xc] sm:$0xf]
        %v270 = vld [vmem:[%s1 + $0x10] sm:$0xf]
        %v271 = vld [vmem:[%s1 + $0x14] sm:$0xf]
        %v272 = vld [vmem:[%s1 + $0x18] sm:$0xf]
        %v273 = vld [vmem:[%s1 + $0x1c] sm:$0xf]
        %v274 = vld [vmem:[%s2] sm:$0x1]
        %v276 = vperm.slane %v274, 0
        %v286 = vunpack.c.l.b16 %v266
        %v287 = vunpack.c.l.b16 %v267
        %v288 = vunpack.c.l.b16 %v268
        %v289 = vunpack.c.l.b16 %v269
        %v290 = vunpack.c.l.b16 %v270
        %v291 = vunpack.c.l.b16 %v271
        %v292 = vunpack.c.l.b16 %v272
        %v293 = vunpack.c.l.b16 %v273
        %v294 = vpack.c.b16 %v287, %v286
        %v295 = vpack.c.b16 %v289, %v288
        %v296 = vpack.c.b16 %v291, %v290
        %v297 = vpack.c.b16 %v293, %v292
        %vm302 = vcmask 523264
        %v304 = vsel %vm302, %v264, 0
        %v307 = vsel %vm302, %v265, 0
        %309 = vmatpush.bf16.msra.mxu0 0
        %310 = vmatpush.bf16.msra.mxu0 0
        %311 = vmatpush.bf16.msra.mxu0 0
        %312 = vmatpush.bf16.msra.mxu0 0
        %313 = vmatpush.bf16.msra.mxu0 %v297
        %314 = vmatpush.bf16.msra.mxu0 %v296
        %315 = vmatpush.bf16.msra.mxu0 %v295
        %316 = vmatpush.bf16.msra.mxu0 %v294
        %317 = vmatmul.bf16.gmra.mxu0 %v304
        %v318 = vpop.f32.mrf.mxu0
        %v319 = vadd.f32 %v276, %v318
        %v320 = vpop.f32.mrf.mxu0
        %v321 = vadd.f32 %v276, %v320
        %322 = vmatmul.bf16.gmra.mxu0 %v307
        %v323 = vpop.f32.mrf.mxu0
        %v324 = vadd.f32 %v276, %v323
        %v325 = vpop.f32.mrf.mxu0
        %326 = vdwg.mxu0
        %v327 = vadd.f32 %v319, %v321
        %v328 = vadd.f32 %v327, %v324
        %v329 = vrcp.pop 3.0
        %v330 = vmul.f32 3.0, %v329
        %v331 = vsub.f32 1.0, %v330
        %v332 = vmul.f32 %v329, %v331
        %v333 = vadd.f32 %v329, %v332
        %vm334 = vweird.f32 %v329
        %v335 = vsel %vm334, %v329, %v333
        %v336 = vmul.f32 %v328, %v335
        %337 = vst [vmem:[%s259] sm:$0xff] %v336
        %v338 = vsel %vm302, %v261, -inf
        %v339 = vrot.slane %v338, 4
        %v340 = vmax.f32 %v338, %v339
        %v341 = vrot.slane %v340, 2
        %v342 = vmax.f32 %v340, %v341
        %v343 = vrot.slane %v342, 1
        %v344 = vmax.f32 %v342, %v343
        %v345 = vsel %vm302, %v262, -inf
        %v346 = vrot.slane %v345, 4
        %v347 = vmax.f32 %v345, %v346
        %v348 = vrot.slane %v347, 2
        %v349 = vmax.f32 %v347, %v348
        %v350 = vrot.slane %v349, 1
        %v351 = vmax.f32 %v349, %v350
        %v352 = vsel %vm302, %v263, -inf
        %v353 = vrot.slane %v352, 4
        %v354 = vmax.f32 %v352, %v353
        %v355 = vrot.slane %v354, 2
        %v356 = vmax.f32 %v354, %v355
        %v357 = vrot.slane %v356, 1
        %v358 = vmax.f32 %v356, %v357
        %v359 = vpack.c.bf16 %v344, %v344
        %v360 = vpack.c.bf16 %v351, %v351
        %v361 = vpack.c.bf16 %v358, %v358
        %v362 = vld [vmem:[%s3] sm:$0xf]
        %v363 = vld [vmem:[%s3 + $0x4] sm:$0xf]
        %v364 = vld [vmem:[%s3 + $0x8] sm:$0xf]
        %v365 = vld [vmem:[%s3 + $0xc] sm:$0xf]
        %v366 = vld [vmem:[%s3 + $0x10] sm:$0xf]
        %v367 = vld [vmem:[%s3 + $0x14] sm:$0xf]
        %v368 = vld [vmem:[%s3 + $0x18] sm:$0xf]
        %v369 = vld [vmem:[%s3 + $0x1c] sm:$0xf]
        %v370 = vld [vmem:[%s4] sm:$0x1]
        %v372 = vperm.slane %v370, 0
        %v377 = vunpack.c.l.b16 %v359
        %v378 = vunpack.c.l.b16 %v360
        %v379 = vunpack.c.l.b16 %v361
        %vm380 = vcmask 1041409
        %v381 = vsel %vm380, %v378, %v377
        %vm382 = vcmask 1042434
        %v383 = vsel %vm382, %v379, %v381
        %v384 = vpack.c.b16 %v383, %v383
        %v393 = vunpack.c.l.b16 %v362
        %v394 = vunpack.c.l.b16 %v363
        %v395 = vunpack.c.l.b16 %v364
        %v396 = vunpack.c.l.b16 %v365
        %v397 = vunpack.c.l.b16 %v366
        %v398 = vunpack.c.l.b16 %v367
        %v399 = vunpack.c.l.b16 %v368
        %v400 = vunpack.c.l.b16 %v369
        %v401 = vpack.c.b16 %v394, %v393
        %v402 = vpack.c.b16 %v396, %v395
        %v403 = vpack.c.b16 %v398, %v397
        %v404 = vpack.c.b16 %v400, %v399
        %v410 = vsel %vm302, %v384, 0
        %412 = vmatpush.bf16.msra.mxu0 0
        %413 = vmatpush.bf16.msra.mxu0 0
        %414 = vmatpush.bf16.msra.mxu0 0
        %415 = vmatpush.bf16.msra.mxu0 0
        %416 = vmatpush.bf16.msra.mxu0 %v404
        %417 = vmatpush.bf16.msra.mxu0 %v403
        %418 = vmatpush.bf16.msra.mxu0 %v402
        %419 = vmatpush.bf16.msra.mxu0 %v401
        %420 = vmatmul.bf16.gmra.mxu0 %v410
        %v421 = vpop.f32.mrf.mxu0
        %v422 = vadd.f32 %v372, %v421
        %v423 = vpop.f32.mrf.mxu0
        %424 = vdwg.mxu0
        %vm425 = vcmask 1042432
        %v426 = vsel %vm425, %v422, 0.0
        %v427 = vrot.slane %v426, 4
        %v428 = vadd.f32 %v426, %v427
        %v429 = vrot.slane %v428, 2
        %v430 = vadd.f32 %v428, %v429
        %v431 = vrot.slane %v430, 1
        %v432 = vadd.f32 %v430, %v431
        %v433 = vmul.f32 %v432, %v335
        %434 = vst [vmem:[%s250] sm:$0x1] %v433
        %p435 = scmp.lt.s32.totalorder %s21, 1
        %s436 = scalar_select %p435, %s21, 1
        %s437 = smul.addr %s436, 8
        %s438 = scalar_lea.vmem %s5, %s437
        %s439 = sand.u32 %s165, 1
        %s440 = scalar_lea.sflag [#allocation3], %s439
        %s441 = sand.u32 %s165, 1
        %s442 = scalar_lea.vmem [#allocation2], %s441
        // Predicated region
        $region41: #{gcnnet_volleyball_forward.5} parent=39 // pred_check
          %p443 = pneg %p149
        $region42: #{gcnnet_volleyball_forward.5} parent=39 // pred_check_branch
          %445 = sbr.rel (%p443) target = $region44
        $region43: #{gcnnet_volleyball_forward.5} parent=39 // pred_region
          _
        $region44: #{gcnnet_volleyball_forward.5} parent=39 // pred_fallthru
          _
        // Predicated region
        $region45: #{gcnnet_volleyball_forward.5} parent=39 // pred_check
          %p446 = pneg %p175
        $region46: #{gcnnet_volleyball_forward.5} parent=39 // pred_check_branch
          %448 = sbr.rel (%p446) target = $region48
        $region47: #{gcnnet_volleyball_forward.5} parent=39 // pred_region
          %450 = vsyncadd %s440, 0
          %s451 = scalar_lea.hbm %s6, %s21
          %s453 = sshll.u32 %s442, 4
          %s454 = int_to_ptr.vmem [resolvable:$true] %s453
          %s455 = sshll.u32 %s451, 4
          %s456 = int_to_ptr.hbm [resolvable:$true] %s455
          %458 = dma.vmem_to_hbm [thread:$0]  %s454, 16, %s456, %s440
        $region48: #{gcnnet_volleyball_forward.5} parent=39 // pred_fallthru
          _
      $region40: #{gcnnet_volleyball_forward.5} parent=5 // pred_fallthru
        _
      %p459 = scmp.le.s32.totalorder 2, %s16
      // Predicated region
      $region49: #{gcnnet_volleyball_forward.5} parent=5 // pred_check
        %p460 = pneg %p459
      $region50: #{gcnnet_volleyball_forward.5} parent=5 // pred_check_branch
        %462 = sbr.rel (%p460) target = $region52
      $region51: #{gcnnet_volleyball_forward.5} parent=5 // pred_region
        %s463 = ssub.s32 %s16, 2
        // Predicated region
        $region53: #{gcnnet_volleyball_forward.5} parent=51 // pred_check
          %p464 = pneg %p155
        $region54: #{gcnnet_volleyball_forward.5} parent=51 // pred_check_branch
          %466 = sbr.rel (%p464) target = $region56
        $region55: #{gcnnet_volleyball_forward.5} parent=51 // pred_region
          %p467 = scmp.lt.s32.totalorder %s22, 1
          %s468 = scalar_select %p467, %s22, 1
          %s469 = smul.addr %s468, 8
          %s470 = scalar_lea.vmem %s5, %s469
        $region56: #{gcnnet_volleyball_forward.5} parent=51 // pred_fallthru
          _
        // Predicated region
        $region57: #{gcnnet_volleyball_forward.5} parent=51 // pred_check
          %p471 = pneg %p181
        $region58: #{gcnnet_volleyball_forward.5} parent=51 // pred_check_branch
          %473 = sbr.rel (%p471) target = $region60
        $region59: #{gcnnet_volleyball_forward.5} parent=51 // pred_region
          %s474 = sand.u32 %s166, 1
          %s475 = scalar_lea.sflag [#allocation3], %s474
          %s476 = sand.u32 %s166, 1
          %s477 = scalar_lea.vmem [#allocation2], %s476
          %479 = dma.done %s475, 16
        $region60: #{gcnnet_volleyball_forward.5} parent=51 // pred_fallthru
          _
      $region52: #{gcnnet_volleyball_forward.5} parent=5 // pred_fallthru
        _
    $region6: #{gcnnet_volleyball_forward.5} parent=1 // loop_footer
      %s20 = sadd.s32 1, %s16
    $region7: #{gcnnet_volleyball_forward.5} parent=1 // loop_footer_branch
      %15 = sbr.rel target = $region3
    $region8: #{gcnnet_volleyball_forward.5} parent=1 // loop_exit
      _
    %480 = vsyncpa [#allocation3], 1
    %s481 = scalar_lea.sflag [#allocation3], 1
    %482 = vsyncpa %s481, 1

// kernel: gcnnet_volleyball_forward.4
$region0: #{gcnnet_volleyball_forward.4}
  #allocation0 [shape = 'u32[]', space=smem, size = 0x4, offset = 0x4, fixed_abs, tag = 'smem constant byte address 0x4 - core index']
  #allocation1 [shape = 'u32[72,128]{1,0:T(1,128)}', space=vmem, size = 0x9000, scoped, tag = 'internal scratch']
  #allocation2 [shape = 'f32[24,64]{1,0:T(8,128)}', space=vmem, size = 0x3000, scoped, tag = 'scratch operand']
  %s0 = inlined_call_operand.vmem [shape: f32[2,24,64], index: 0, kind: input, shape index: {}]
  %s1 = inlined_call_operand.vmem [shape: f32[2,24,24], index: 1, kind: input, shape index: {}]
  %s2 = inlined_call_operand.vmem [shape: bf16[2,64,64], index: 2, kind: input, shape index: {}]
  %s3 = inlined_call_operand.vmem [shape: f32[2,1,64], index: 3, kind: input, shape index: {}]
  %s4 = inlined_call_operand.vmem [shape: bf16[2,64,64], index: 4, kind: input, shape index: {}]
  %s5 = inlined_call_operand.vmem [shape: f32[2,24,64], index: 5, kind: input, shape index: {}]
  %s6 = inlined_call_operand.vmem [shape: f32[2,24,64], index: 6, kind: input, shape index: {}]
  %s7 = inlined_call_operand.vmem [shape: f32[2,24,64], index: 7, kind: output, shape index: {0}]
  %s8 = inlined_call_operand.hbm [shape: f32[2,24,128], index: 8, kind: output, shape index: {1}]
  %9 = xla_tuple %s7, %s8
  %s10 = sld [smem:[#allocation0]]
  $region77: #{gcnnet_volleyball_forward.4} parent=0
    _
  %s12 = ssub.s32 1, %s10
  %s13 = scalar_select 0, %s12, %s10
  $region1: #{gcnnet_volleyball_forward.4} parent=0
    #allocation3 [shape = 'u8[24576]{0}', space=vmem, size = 0x6000, scoped, tag = 'output window, operand 1']
    #allocation4 [shape = 's32[2]{0}', space=sflag, size = 0x8, scoped, tag = 'scoped memory for gcnnet_volleyball_forward.4']
    %14 = vsyncpa [#allocation4], 0
    %s15 = scalar_lea.sflag [#allocation4], 1
    %16 = vsyncpa %s15, 0
    loop: start=0, step=1, limit=6
    $region2: #{gcnnet_volleyball_forward.4} parent=1 // loop_pre_header
      _
    $region3: #{gcnnet_volleyball_forward.4} parent=1 // loop_header
      %s18 = sphi 0, %s22
      %p19 = scmp.ge.s32.totalorder %s18, 6
      %s25 = sphi 0, %s37
      %s26 = sphi 0, %s33
      %s27 = sphi 0, %s25
      %s28 = sphi 0, %s26
      %s29 = sphi 0, %s27
      %s30 = sphi 0, %s28
      %s40 = sphi 0, %s42
      %s43 = sphi 0, %s40
      %s44 = sphi 0, %s43
      %s60 = sphi 0, %s44
      %s66 = sphi 0, %s68
      %s69 = sphi 0, %s66
      %s70 = sphi 0, %s69
      %s86 = sphi 0, %s70
      %s92 = sphi 0, %s94
      %s95 = sphi 0, %s92
      %s96 = sphi 0, %s95
      %s112 = sphi 0, %s96
      %s118 = sphi 0, %s120
      %s121 = sphi 0, %s118
      %s122 = sphi 0, %s121
      %s138 = sphi 0, %s122
      %s144 = sphi 0, %s146
      %s147 = sphi 0, %s144
      %s148 = sphi 0, %s147
      %s164 = sphi 0, %s148
      %s170 = sphi 0, %s172
      %s173 = sphi 0, %s170
      %s174 = sphi 0, %s173
      %s190 = sphi 0, %s174
      %s196 = sphi 0, %s198
      %s199 = sphi 0, %s196
      %s200 = sphi 0, %s199
      %s216 = sphi 0, %s200
      %s222 = sphi 0, %s224
      %s225 = sphi 0, %s222
      %s226 = sphi 0, %s225
      %s242 = sphi 0, %s226
      %s248 = sphi 0, %s250
      %s251 = sphi 0, %s248
      %s252 = sphi 0, %s251
      %s268 = sphi 0, %s252
    $region4: #{gcnnet_volleyball_forward.4} parent=1 // loop_header_branch
      %21 = sbr.rel (%p19) target = $region8
    $region5: #{gcnnet_volleyball_forward.4} parent=1 // loop_body
      %s23 = ssub.s32 %s18, 1
      %s24 = ssub.s32 %s18, 2
      %s31 = sadd.s32 1, %s26
      %p32 = scmp.ge.s32.totalorder %s31, 2
      %s33 = scalar_select %p32, 0, %s31
      %s34 = sadd.s32 1, %s25
      %s35 = scalar_select %p32, %s34, %s25
      %p36 = scmp.ge.s32.totalorder %s35, 2
      %s37 = scalar_select %p36, 0, %s35
      %s38 = ssub.s32 %s25, %s37
      %p39 = scmp.eq.s32.totalorder %s38, 0
      %s41 = sadd.s32 %s40, 1
      %s42 = scalar_select %p39, %s40, %s41
      %p45 = pneg %p39
      %p46 = scmp.eq.s32.totalorder %s18, 3
      %p47 = por %p45, %p46
      %p48 = scmp.ne.s32.totalorder %s40, %s43
      %p49 = scmp.eq.s32.totalorder %s18, 0
      %p50 = por %p48, %p49
      %p51 = scmp.ne.s32.totalorder %s40, %s43
      %p52 = scmp.eq.s32.totalorder %s23, 3
      %p53 = por %p51, %p52
      %p54 = scmp.ne.s32.totalorder %s43, %s44
      %p55 = scmp.eq.s32.totalorder %s23, 0
      %p56 = por %p54, %p55
      %p57 = scmp.ne.s32.totalorder %s43, %s44
      %p58 = scmp.eq.s32.totalorder %s24, 3
      %p59 = por %p57, %p58
      %p61 = scmp.ne.s32.totalorder %s44, %s60
      %p62 = scmp.eq.s32.totalorder %s24, 0
      %p63 = por %p61, %p62
      %s64 = ssub.s32 %s25, %s37
      %p65 = scmp.eq.s32.totalorder %s64, 0
      %s67 = sadd.s32 %s66, 1
      %s68 = scalar_select %p65, %s66, %s67
      %p71 = pneg %p65
      %p72 = scmp.eq.s32.totalorder %s18, 3
      %p73 = por %p71, %p72
      %p74 = scmp.ne.s32.totalorder %s66, %s69
      %p75 = scmp.eq.s32.totalorder %s18, 0
      %p76 = por %p74, %p75
      %p77 = scmp.ne.s32.totalorder %s66, %s69
      %p78 = scmp.eq.s32.totalorder %s23, 3
      %p79 = por %p77, %p78
      %p80 = scmp.ne.s32.totalorder %s69, %s70
      %p81 = scmp.eq.s32.totalorder %s23, 0
      %p82 = por %p80, %p81
      %p83 = scmp.ne.s32.totalorder %s69, %s70
      %p84 = scmp.eq.s32.totalorder %s24, 3
      %p85 = por %p83, %p84
      %p87 = scmp.ne.s32.totalorder %s70, %s86
      %p88 = scmp.eq.s32.totalorder %s24, 0
      %p89 = por %p87, %p88
      %s90 = ssub.s32 %s26, %s33
      %p91 = scmp.eq.s32.totalorder %s90, 0
      %s93 = sadd.s32 %s92, 1
      %s94 = scalar_select %p91, %s92, %s93
      %p97 = pneg %p91
      %p98 = scmp.eq.s32.totalorder %s18, 3
      %p99 = por %p97, %p98
      %p100 = scmp.ne.s32.totalorder %s92, %s95
      %p101 = scmp.eq.s32.totalorder %s18, 0
      %p102 = por %p100, %p101
      %p103 = scmp.ne.s32.totalorder %s92, %s95
      %p104 = scmp.eq.s32.totalorder %s23, 3
      %p105 = por %p103, %p104
      %p106 = scmp.ne.s32.totalorder %s95, %s96
      %p107 = scmp.eq.s32.totalorder %s23, 0
      %p108 = por %p106, %p107
      %p109 = scmp.ne.s32.totalorder %s95, %s96
      %p110 = scmp.eq.s32.totalorder %s24, 3
      %p111 = por %p109, %p110
      %p113 = scmp.ne.s32.totalorder %s96, %s112
      %p114 = scmp.eq.s32.totalorder %s24, 0
      %p115 = por %p113, %p114
      %s116 = ssub.s32 %s26, %s33
      %p117 = scmp.eq.s32.totalorder %s116, 0
      %s119 = sadd.s32 %s118, 1
      %s120 = scalar_select %p117, %s118, %s119
      %p123 = pneg %p117
      %p124 = scmp.eq.s32.totalorder %s18, 3
      %p125 = por %p123, %p124
      %p126 = scmp.ne.s32.totalorder %s118, %s121
      %p127 = scmp.eq.s32.totalorder %s18, 0
      %p128 = por %p126, %p127
      %p129 = scmp.ne.s32.totalorder %s118, %s121
      %p130 = scmp.eq.s32.totalorder %s23, 3
      %p131 = por %p129, %p130
      %p132 = scmp.ne.s32.totalorder %s121, %s122
      %p133 = scmp.eq.s32.totalorder %s23, 0
      %p134 = por %p132, %p133
      %p135 = scmp.ne.s32.totalorder %s121, %s122
      %p136 = scmp.eq.s32.totalorder %s24, 3
      %p137 = por %p135, %p136
      %p139 = scmp.ne.s32.totalorder %s122, %s138
      %p140 = scmp.eq.s32.totalorder %s24, 0
      %p141 = por %p139, %p140
      %s142 = ssub.s32 %s26, %s33
      %p143 = scmp.eq.s32.totalorder %s142, 0
      %s145 = sadd.s32 %s144, 1
      %s146 = scalar_select %p143, %s144, %s145
      %p149 = pneg %p143
      %p150 = scmp.eq.s32.totalorder %s18, 3
      %p151 = por %p149, %p150
      %p152 = scmp.ne.s32.totalorder %s144, %s147
      %p153 = scmp.eq.s32.totalorder %s18, 0
      %p154 = por %p152, %p153
      %p155 = scmp.ne.s32.totalorder %s144, %s147
      %p156 = scmp.eq.s32.totalorder %s23, 3
      %p157 = por %p155, %p156
      %p158 = scmp.ne.s32.totalorder %s147, %s148
      %p159 = scmp.eq.s32.totalorder %s23, 0
      %p160 = por %p158, %p159
      %p161 = scmp.ne.s32.totalorder %s147, %s148
      %p162 = scmp.eq.s32.totalorder %s24, 3
      %p163 = por %p161, %p162
      %p165 = scmp.ne.s32.totalorder %s148, %s164
      %p166 = scmp.eq.s32.totalorder %s24, 0
      %p167 = por %p165, %p166
      %s168 = ssub.s32 %s26, %s33
      %p169 = scmp.eq.s32.totalorder %s168, 0
      %s171 = sadd.s32 %s170, 1
      %s172 = scalar_select %p169, %s170, %s171
      %p175 = pneg %p169
      %p176 = scmp.eq.s32.totalorder %s18, 3
      %p177 = por %p175, %p176
      %p178 = scmp.ne.s32.totalorder %s170, %s173
      %p179 = scmp.eq.s32.totalorder %s18, 0
      %p180 = por %p178, %p179
      %p181 = scmp.ne.s32.totalorder %s170, %s173
      %p182 = scmp.eq.s32.totalorder %s23, 3
      %p183 = por %p181, %p182
      %p184 = scmp.ne.s32.totalorder %s173, %s174
      %p185 = scmp.eq.s32.totalorder %s23, 0
      %p186 = por %p184, %p185
      %p187 = scmp.ne.s32.totalorder %s173, %s174
      %p188 = scmp.eq.s32.totalorder %s24, 3
      %p189 = por %p187, %p188
      %p191 = scmp.ne.s32.totalorder %s174, %s190
      %p192 = scmp.eq.s32.totalorder %s24, 0
      %p193 = por %p191, %p192
      %s194 = ssub.s32 %s26, %s33
      %p195 = scmp.eq.s32.totalorder %s194, 0
      %s197 = sadd.s32 %s196, 1
      %s198 = scalar_select %p195, %s196, %s197
      %p201 = pneg %p195
      %p202 = scmp.eq.s32.totalorder %s18, 3
      %p203 = por %p201, %p202
      %p204 = scmp.ne.s32.totalorder %s196, %s199
      %p205 = scmp.eq.s32.totalorder %s18, 0
      %p206 = por %p204, %p205
      %p207 = scmp.ne.s32.totalorder %s196, %s199
      %p208 = scmp.eq.s32.totalorder %s23, 3
      %p209 = por %p207, %p208
      %p210 = scmp.ne.s32.totalorder %s199, %s200
      %p211 = scmp.eq.s32.totalorder %s23, 0
      %p212 = por %p210, %p211
      %p213 = scmp.ne.s32.totalorder %s199, %s200
      %p214 = scmp.eq.s32.totalorder %s24, 3
      %p215 = por %p213, %p214
      %p217 = scmp.ne.s32.totalorder %s200, %s216
      %p218 = scmp.eq.s32.totalorder %s24, 0
      %p219 = por %p217, %p218
      %s220 = ssub.s32 %s25, %s37
      %p221 = scmp.eq.s32.totalorder %s220, 0
      %s223 = sadd.s32 %s222, 1
      %s224 = scalar_select %p221, %s222, %s223
      %p227 = pneg %p221
      %p228 = scmp.eq.s32.totalorder %s18, 3
      %p229 = por %p227, %p228
      %p230 = scmp.ne.s32.totalorder %s222, %s225
      %p231 = scmp.eq.s32.totalorder %s18, 0
      %p232 = por %p230, %p231
      %p233 = scmp.ne.s32.totalorder %s222, %s225
      %p234 = scmp.eq.s32.totalorder %s23, 3
      %p235 = por %p233, %p234
      %p236 = scmp.ne.s32.totalorder %s225, %s226
      %p237 = scmp.eq.s32.totalorder %s23, 0
      %p238 = por %p236, %p237
      %p239 = scmp.ne.s32.totalorder %s225, %s226
      %p240 = scmp.eq.s32.totalorder %s24, 3
      %p241 = por %p239, %p240
      %p243 = scmp.ne.s32.totalorder %s226, %s242
      %p244 = scmp.eq.s32.totalorder %s24, 0
      %p245 = por %p243, %p244
      %s246 = ssub.s32 %s25, %s37
      %p247 = scmp.eq.s32.totalorder %s246, 0
      %s249 = sadd.s32 %s248, 1
      %s250 = scalar_select %p247, %s248, %s249
      %p253 = pneg %p247
      %p254 = scmp.eq.s32.totalorder %s18, 3
      %p255 = por %p253, %p254
      %p256 = scmp.ne.s32.totalorder %s248, %s251
      %p257 = scmp.eq.s32.totalorder %s18, 0
      %p258 = por %p256, %p257
      %p259 = scmp.ne.s32.totalorder %s248, %s251
      %p260 = scmp.eq.s32.totalorder %s23, 3
      %p261 = por %p259, %p260
      %p262 = scmp.ne.s32.totalorder %s251, %s252
      %p263 = scmp.eq.s32.totalorder %s23, 0
      %p264 = por %p262, %p263
      %p265 = scmp.ne.s32.totalorder %s251, %s252
      %p266 = scmp.eq.s32.totalorder %s24, 3
      %p267 = por %p265, %p266
      %p269 = scmp.ne.s32.totalorder %s252, %s268
      %p270 = scmp.eq.s32.totalorder %s24, 0
      %p271 = por %p269, %p270
      %p272 = scmp.le.s32.totalorder 1, %s18
      %p273 = scmp.lt.s32.totalorder %s18, 5
      %p274 = pnand %p272, %p273
      %p275 = pneg %p274
      // Predicated region
      $region9: #{gcnnet_volleyball_forward.4} parent=5 // pred_check
        _
      $region10: #{gcnnet_volleyball_forward.4} parent=5 // pred_check_branch
        %277 = sbr.rel (%p274) target = $region12
      $region11: #{gcnnet_volleyball_forward.4} parent=5 // pred_region
        %s278 = ssub.s32 %s18, 1
      $region12: #{gcnnet_volleyball_forward.4} parent=5 // pred_fallthru
        _
      %p279 = scmp.lt.s32.totalorder %s18, 4
      // Predicated region
      $region13: #{gcnnet_volleyball_forward.4} parent=5 // pred_check
        %p280 = pneg %p279
      $region14: #{gcnnet_volleyball_forward.4} parent=5 // pred_check_branch
        %282 = sbr.rel (%p280) target = $region16
      $region15: #{gcnnet_volleyball_forward.4} parent=5 // pred_region
        // Predicated region
        $region17: #{gcnnet_volleyball_forward.4} parent=15 // pred_check
          %p283 = pneg %p50
        $region18: #{gcnnet_volleyball_forward.4} parent=15 // pred_check_branch
          %285 = sbr.rel (%p283) target = $region20
        $region19: #{gcnnet_volleyball_forward.4} parent=15 // pred_region
          %p286 = scmp.lt.s32.totalorder %s25, 1
          %s287 = scalar_select %p286, %s25, 1
          %s288 = smul.addr %s287, 3
          %s289 = smul.addr %s288, 8
          %s290 = scalar_lea.vmem %s0, %s289
        $region20: #{gcnnet_volleyball_forward.4} parent=15 // pred_fallthru
          _
        // Predicated region
        $region21: #{gcnnet_volleyball_forward.4} parent=15 // pred_check
          %p291 = pneg %p76
        $region22: #{gcnnet_volleyball_forward.4} parent=15 // pred_check_branch
          %293 = sbr.rel (%p291) target = $region24
        $region23: #{gcnnet_volleyball_forward.4} parent=15 // pred_region
          %p294 = scmp.lt.s32.totalorder %s25, 1
          %s295 = scalar_select %p294, %s25, 1
          %s296 = smul.addr %s295, 3
          %s297 = smul.addr %s296, 8
          %s298 = scalar_lea.vmem %s1, %s297
        $region24: #{gcnnet_volleyball_forward.4} parent=15 // pred_fallthru
          _
        // Predicated region
        $region25: #{gcnnet_volleyball_forward.4} parent=15 // pred_check
          %p299 = pneg %p102
        $region26: #{gcnnet_volleyball_forward.4} parent=15 // pred_check_branch
          %301 = sbr.rel (%p299) target = $region28
        $region27: #{gcnnet_volleyball_forward.4} parent=15 // pred_region
          %p302 = scmp.lt.s32.totalorder %s26, 1
          %s303 = scalar_select %p302, %s26, 1
          %s304 = smul.addr %s303, 8
          %s305 = smul.addr %s304, 4
          %s306 = scalar_lea.vmem %s2, %s305
        $region28: #{gcnnet_volleyball_forward.4} parent=15 // pred_fallthru
          _
        // Predicated region
        $region29: #{gcnnet_volleyball_forward.4} parent=15 // pred_check
          %p307 = pneg %p128
        $region30: #{gcnnet_volleyball_forward.4} parent=15 // pred_check_branch
          %309 = sbr.rel (%p307) target = $region32
        $region31: #{gcnnet_volleyball_forward.4} parent=15 // pred_region
          %p310 = scmp.lt.s32.totalorder %s26, 1
          %s311 = scalar_select %p310, %s26, 1
          %s312 = scalar_lea.vmem %s3, %s311
        $region32: #{gcnnet_volleyball_forward.4} parent=15 // pred_fallthru
          _
        // Predicated region
        $region33: #{gcnnet_volleyball_forward.4} parent=15 // pred_check
          %p313 = pneg %p154
        $region34: #{gcnnet_volleyball_forward.4} parent=15 // pred_check_branch
          %315 = sbr.rel (%p313) target = $region36
        $region35: #{gcnnet_volleyball_forward.4} parent=15 // pred_region
          %p316 = scmp.lt.s32.totalorder %s26, 1
          %s317 = scalar_select %p316, %s26, 1
          %s318 = smul.addr %s317, 8
          %s319 = smul.addr %s318, 4
          %s320 = scalar_lea.vmem %s4, %s319
        $region36: #{gcnnet_volleyball_forward.4} parent=15 // pred_fallthru
          _
        // Predicated region
        $region37: #{gcnnet_volleyball_forward.4} parent=15 // pred_check
          %p321 = pneg %p180
        $region38: #{gcnnet_volleyball_forward.4} parent=15 // pred_check_branch
          %323 = sbr.rel (%p321) target = $region40
        $region39: #{gcnnet_volleyball_forward.4} parent=15 // pred_region
          %p324 = scmp.lt.s32.totalorder %s26, 1
          %s325 = scalar_select %p324, %s26, 1
          %s326 = smul.addr %s325, 3
          %s327 = smul.addr %s326, 8
          %s328 = scalar_lea.vmem %s5, %s327
        $region40: #{gcnnet_volleyball_forward.4} parent=15 // pred_fallthru
          _
        // Predicated region
        $region41: #{gcnnet_volleyball_forward.4} parent=15 // pred_check
          %p329 = pneg %p206
        $region42: #{gcnnet_volleyball_forward.4} parent=15 // pred_check_branch
          %331 = sbr.rel (%p329) target = $region44
        $region43: #{gcnnet_volleyball_forward.4} parent=15 // pred_region
          %p332 = scmp.lt.s32.totalorder %s26, 1
          %s333 = scalar_select %p332, %s26, 1
          %s334 = smul.addr %s333, 3
          %s335 = smul.addr %s334, 8
          %s336 = scalar_lea.vmem %s6, %s335
        $region44: #{gcnnet_volleyball_forward.4} parent=15 // pred_fallthru
          _
      $region16: #{gcnnet_volleyball_forward.4} parent=5 // pred_fallthru
        _
      %p337 = scmp.le.s32.totalorder 1, %s18
      %p338 = scmp.lt.s32.totalorder %s18, 5
      %p339 = pnand %p337, %p338
      %p340 = pneg %p339
      // Predicated region
      $region45: #{gcnnet_volleyball_forward.4} parent=5 // pred_check
        _
      $region46: #{gcnnet_volleyball_forward.4} parent=5 // pred_check_branch
        %342 = sbr.rel (%p339) target = $region48
      $region47: #{gcnnet_volleyball_forward.4} parent=5 // pred_region
        %s343 = ssub.s32 %s18, 1
        %p344 = scmp.lt.s32.totalorder %s27, 1
        %s345 = scalar_select %p344, %s27, 1
        %s346 = smul.addr %s345, 3
        %s347 = smul.addr %s346, 8
        %s348 = scalar_lea.vmem %s0, %s347
        %p349 = pneg %p56
        %p350 = pneg %p53
        %p351 = scmp.lt.s32.totalorder %s27, 1
        %s352 = scalar_select %p351, %s27, 1
        %s353 = smul.addr %s352, 3
        %s354 = smul.addr %s353, 8
        %s355 = scalar_lea.vmem %s1, %s354
        %p356 = pneg %p82
        %p357 = pneg %p79
        %p358 = scmp.lt.s32.totalorder %s28, 1
        %s359 = scalar_select %p358, %s28, 1
        %s360 = smul.addr %s359, 8
        %s361 = smul.addr %s360, 4
        %s362 = scalar_lea.vmem %s2, %s361
        %p363 = pneg %p108
        %p364 = pneg %p105
        %p365 = scmp.lt.s32.totalorder %s28, 1
        %s366 = scalar_select %p365, %s28, 1
        %s367 = scalar_lea.vmem %s3, %s366
        %p368 = pneg %p134
        %p369 = pneg %p131
        %p370 = scmp.lt.s32.totalorder %s28, 1
        %s371 = scalar_select %p370, %s28, 1
        %s372 = smul.addr %s371, 8
        %s373 = smul.addr %s372, 4
        %s374 = scalar_lea.vmem %s4, %s373
        %p375 = pneg %p160
        %p376 = pneg %p157
        %p377 = scmp.lt.s32.totalorder %s28, 1
        %s378 = scalar_select %p377, %s28, 1
        %s379 = smul.addr %s378, 3
        %s380 = smul.addr %s379, 8
        %s381 = scalar_lea.vmem %s5, %s380
        %p382 = pneg %p186
        %p383 = pneg %p183
        %p384 = scmp.lt.s32.totalorder %s28, 1
        %s385 = scalar_select %p384, %s28, 1
        %s386 = smul.addr %s385, 3
        %s387 = smul.addr %s386, 8
        %s388 = scalar_lea.vmem %s6, %s387
        %p389 = pneg %p212
        %p390 = pneg %p209
        %p391 = pneg %p238
        %p392 = pneg %p235
        %p393 = scmp.lt.s32.totalorder %s27, 1
        %s394 = scalar_select %p393, %s27, 1
        %s395 = smul.addr %s394, 3
        %s396 = smul.addr %s395, 8
        %s397 = scalar_lea.vmem %s7, %s396
        %p398 = pneg %p264
        %p399 = pneg %p261
        %s400 = sand.u32 %s251, 1
        %s401 = scalar_lea.sflag [#allocation4], %s400
        %s402 = sand.u32 %s251, 1
        %s403 = smul.addr %s402, 24
        %s404 = scalar_lea.vmem [#allocation3], %s403
        %p405 = scmp.lt.s32.totalorder %s27, 1
        %s406 = scalar_select %p405, %s27, 1
        %s407 = smul.addr %s406, 3
        %s408 = smul.addr %s407, 8
        %s409 = scalar_lea.vmem %s0, %s408
        %p410 = scmp.lt.s32.totalorder %s27, 1
        %s411 = scalar_select %p410, %s27, 1
        %s412 = smul.addr %s411, 3
        %s413 = smul.addr %s412, 8
        %s414 = scalar_lea.vmem %s1, %s413
        %p415 = scmp.lt.s32.totalorder %s28, 1
        %s416 = scalar_select %p415, %s28, 1
        %s417 = smul.addr %s416, 8
        %s418 = smul.addr %s417, 4
        %s419 = scalar_lea.vmem %s2, %s418
        %p420 = scmp.lt.s32.totalorder %s28, 1
        %s421 = scalar_select %p420, %s28, 1
        %s422 = scalar_lea.vmem %s3, %s421
        %p423 = scmp.lt.s32.totalorder %s28, 1
        %s424 = scalar_select %p423, %s28, 1
        %s425 = smul.addr %s424, 8
        %s426 = smul.addr %s425, 4
        %s427 = scalar_lea.vmem %s4, %s426
        %p428 = scmp.lt.s32.totalorder %s28, 1
        %s429 = scalar_select %p428, %s28, 1
        %s430 = smul.addr %s429, 3
        %s431 = smul.addr %s430, 8
        %s432 = scalar_lea.vmem %s5, %s431
        %p433 = scmp.lt.s32.totalorder %s28, 1
        %s434 = scalar_select %p433, %s28, 1
        %s435 = smul.addr %s434, 3
        %s436 = smul.addr %s435, 8
        %s437 = scalar_lea.vmem %s6, %s436
        %p438 = scmp.lt.s32.totalorder %s27, 1
        %s439 = scalar_select %p438, %s27, 1
        %s440 = smul.addr %s439, 3
        %s441 = smul.addr %s440, 8
        %s442 = scalar_lea.vmem %s7, %s441
        %p444 = scmp.eq.s32.totalorder %s28, 0
        // Predicated region
        $region49: #{gcnnet_volleyball_forward.4} parent=47 // pred_check
          %p445 = pneg %p444
        $region50: #{gcnnet_volleyball_forward.4} parent=47 // pred_check_branch
          %447 = sbr.rel (%p445) target = $region52
        $region51: #{gcnnet_volleyball_forward.4} parent=47 // pred_region
          %vm448 = vcmask 523264
          %449 = vst.msk [vmem:[#allocation2] sm:$0xff] %vm448, 0.0
          %450 = vst.msk [vmem:[#allocation2 + $0x8] sm:$0xff] %vm448, 0.0
          %451 = vst.msk [vmem:[#allocation2 + $0x10] sm:$0xff] %vm448, 0.0
        $region52: #{gcnnet_volleyball_forward.4} parent=47 // pred_fallthru
          _
        %v452 = vld [vmem:[%s409] sm:$0xff]
        %v453 = vld [vmem:[%s409 + $0x8] sm:$0xff]
        %v454 = vld [vmem:[%s409 + $0x10] sm:$0xff]
        %v455 = vpack.c.bf16 %v453, %v452
        %v456 = vpack.c.bf16 %v454, %v454
        %v457 = vld [vmem:[%s419] sm:$0xf]
        %v458 = vld [vmem:[%s419 + $0x4] sm:$0xf]
        %v459 = vld [vmem:[%s419 + $0x8] sm:$0xf]
        %v460 = vld [vmem:[%s419 + $0xc] sm:$0xf]
        %v461 = vld [vmem:[%s419 + $0x10] sm:$0xf]
        %v462 = vld [vmem:[%s419 + $0x14] sm:$0xf]
        %v463 = vld [vmem:[%s419 + $0x18] sm:$0xf]
        %v464 = vld [vmem:[%s419 + $0x1c] sm:$0xf]
        %v465 = vld [vmem:[%s422] sm:$0x1]
        %v467 = vperm.slane %v465, 0
        %v477 = vunpack.c.l.b16 %v457
        %v478 = vunpack.c.l.b16 %v458
        %v479 = vunpack.c.l.b16 %v459
        %v480 = vunpack.c.l.b16 %v460
        %v481 = vunpack.c.l.b16 %v461
        %v482 = vunpack.c.l.b16 %v462
        %v483 = vunpack.c.l.b16 %v463
        %v484 = vunpack.c.l.b16 %v464
        %v485 = vpack.c.b16 %v478, %v477
        %v486 = vpack.c.b16 %v480, %v479
        %v487 = vpack.c.b16 %v482, %v481
        %v488 = vpack.c.b16 %v484, %v483
        %vm493 = vcmask 523264
        %v495 = vsel %vm493, %v455, 0
        %v498 = vsel %vm493, %v456, 0
        %500 = vmatpush.bf16.msra.mxu0 0
        %501 = vmatpush.bf16.msra.mxu0 0
        %502 = vmatpush.bf16.msra.mxu0 0
        %503 = vmatpush.bf16.msra.mxu0 0
        %504 = vmatpush.bf16.msra.mxu0 %v488
        %505 = vmatpush.bf16.msra.mxu0 %v487
        %506 = vmatpush.bf16.msra.mxu0 %v486
        %507 = vmatpush.bf16.msra.mxu0 %v485
        %508 = vmatmul.bf16.gmra.mxu0 %v495
        %v509 = vpop.f32.mrf.mxu0
        %v510 = vadd.f32 %v467, %v509
        %v511 = vpop.f32.mrf.mxu0
        %v512 = vadd.f32 %v467, %v511
        %513 = vmatmul.bf16.gmra.mxu0 %v498
        %v514 = vpop.f32.mrf.mxu0
        %v515 = vadd.f32 %v467, %v514
        %v516 = vpop.f32.mrf.mxu0
        %517 = vdwg.mxu0
        %v518 = vpack.c.bf16 %v512, %v510
        %v519 = vpack.c.bf16 %v515, %v515
        %522 = vrot.lane.b32.xlu0 %v518, 96
        %v523 = vpop.permute.xlu0 %522
        %524 = vrot.lane.b32.xlu0 %v519, 96
        %v525 = vpop.permute.xlu0 %524
        %vm526 = vcmask 261120
        %v528 = vsel %vm526, %v518, 0
        %v531 = vsel %vm526, %v519, 0
        %v534 = vsel %vm526, %v523, 0
        %v537 = vsel %vm526, %v525, 0
        %539 = vmatpush.bf16.xpose.msra.mxu0 0
        %540 = vmatpush.bf16.xpose.msra.mxu0 0
        %541 = vmatpush.bf16.xpose.msra.mxu0 0
        %542 = vmatpush.bf16.xpose.msra.mxu0 0
        %543 = vmatpush.bf16.xpose.msra.mxu0 0
        %544 = vmatpush.bf16.xpose.msra.mxu0 0
        %545 = vmatpush.bf16.xpose.msra.mxu0 %v537
        %546 = vmatpush.bf16.xpose.msra.mxu0 %v534
        %547 = vmatmul.bf16.gmra.mxu0 %v528
        %v548 = vpop.f32.mrf.mxu0
        %v549 = vadd.f32 0.0, %v548
        %v550 = vpop.f32.mrf.mxu0
        %v551 = vadd.f32 0.0, %v550
        %552 = vmatmul.bf16.gmra.mxu0 %v531
        %v553 = vpop.f32.mrf.mxu0
        %v554 = vadd.f32 0.0, %v553
        %v555 = vpop.f32.mrf.mxu0
        %556 = vdwg.mxu0
        %v557 = vmul.f32 %v549, 0.17677669
        %v558 = vmul.f32 %v551, 0.17677669
        %v559 = vmul.f32 %v554, 0.17677669
        %v560 = vld [vmem:[%s414] sm:$0xff]
        %v561 = vld [vmem:[%s414 + $0x8] sm:$0xff]
        %v562 = vld [vmem:[%s414 + $0x10] sm:$0xff]
        %vm563 = vcmp.gt.f32.partialorder %v560, 0.5
        %vm564 = vcmp.gt.f32.partialorder %v561, 0.5
        %vm565 = vcmp.gt.f32.partialorder %v562, 0.5
        %v566 = vsel %vm563, -1e+30, %v557
        %v567 = vsel %vm564, -1e+30, %v558
        %v568 = vsel %vm565, -1e+30, %v559
        %vm569 = vcmask 195584
        %v570 = vsel %vm569, %v566, -inf
        %571 = vmax.xlane.f32.xlu0 %v570
        %v572 = vpop.xlane.xlu0 %571
        %v573 = vsel %vm569, %v567, -inf
        %574 = vmax.xlane.f32.xlu0 %v573
        %v575 = vpop.xlane.xlu0 %574
        %v576 = vsel %vm569, %v568, -inf
        %577 = vmax.xlane.f32.xlu0 %v576
        %v578 = vpop.xlane.xlu0 %577
        %v579 = vsub.f32 %v566, %v572
        %v580 = vsub.f32 %v567, %v575
        %v581 = vsub.f32 %v568, %v578
        %v582 = vmul.f32 %v579, 1.442695
        %v583 = vpow.pop %v582
        %v584 = vmul.f32 %v580, 1.442695
        %v585 = vpow.pop %v584
        %v586 = vmul.f32 %v581, 1.442695
        %v587 = vpow.pop %v586
        %v588 = vsel %vm569, %v583, 0.0
        %589 = vadd.xlane.f32.xlu0 %v588
        %v590 = vpop.xlane.xlu0 %589
        %v591 = vsel %vm569, %v585, 0.0
        %592 = vadd.xlane.f32.xlu0 %v591
        %v593 = vpop.xlane.xlu0 %592
        %v594 = vsel %vm569, %v587, 0.0
        %595 = vadd.xlane.f32.xlu0 %v594
        %v596 = vpop.xlane.xlu0 %595
        %v597 = vrcp.pop %v590
        %v598 = vmul.f32 %v590, %v597
        %v599 = vsub.f32 1.0, %v598
        %v600 = vmul.f32 %v597, %v599
        %v601 = vadd.f32 %v597, %v600
        %vm602 = vweird.f32 %v590
        %vm603 = vweird.f32 %v597
        %vm604 = vmor %vm602, %vm603
        %v605 = vsel %vm604, %v597, %v601
        %v606 = vand.u32 2147483647, %v590
        %vm607 = vcmp.eq.f32.partialorder %v606, 8.507059e+37
        %v608 = vand.u32 %v590, 2147483648
        %v609 = vor.u32 1.1754944e-38, %v608
        %v610 = vsel %vm607, %v609, %v605
        %v611 = vmul.f32 %v583, %v610
        %v612 = vrcp.pop %v593
        %v613 = vmul.f32 %v593, %v612
        %v614 = vsub.f32 1.0, %v613
        %v615 = vmul.f32 %v612, %v614
        %v616 = vadd.f32 %v612, %v615
        %vm617 = vweird.f32 %v593
        %vm618 = vweird.f32 %v612
        %vm619 = vmor %vm617, %vm618
        %v620 = vsel %vm619, %v612, %v616
        %v621 = vand.u32 2147483647, %v593
        %vm622 = vcmp.eq.f32.partialorder %v621, 8.507059e+37
        %v623 = vand.u32 %v593, 2147483648
        %v624 = vor.u32 1.1754944e-38, %v623
        %v625 = vsel %vm622, %v624, %v620
        %v626 = vmul.f32 %v585, %v625
        %v627 = vrcp.pop %v596
        %v628 = vmul.f32 %v596, %v627
        %v629 = vsub.f32 1.0, %v628
        %v630 = vmul.f32 %v627, %v629
        %v631 = vadd.f32 %v627, %v630
        %vm632 = vweird.f32 %v596
        %vm633 = vweird.f32 %v627
        %vm634 = vmor %vm632, %vm633
        %v635 = vsel %vm634, %v627, %v631
        %v636 = vand.u32 2147483647, %v596
        %vm637 = vcmp.eq.f32.partialorder %v636, 8.507059e+37
        %v638 = vand.u32 %v596, 2147483648
        %v639 = vor.u32 1.1754944e-38, %v638
        %v640 = vsel %vm637, %v639, %v635
        %v641 = vmul.f32 %v587, %v640
        %v642 = vpack.c.bf16 %v626, %v611
        %v643 = vpack.c.bf16 %v641, %v641
        %v645 = vsel %vm569, %v642, 0
        %v648 = vsel %vm569, %v643, 0
        %vm650 = vcmask 1043456
        %v651 = vsel %vm650, %v456, 0
        %653 = vmatpush.bf16.msra.mxu0 0
        %654 = vmatpush.bf16.msra.mxu0 0
        %655 = vmatpush.bf16.msra.mxu0 0
        %656 = vmatpush.bf16.msra.mxu0 0
        %657 = vmatpush.bf16.msra.mxu0 0
        %658 = vmatpush.bf16.msra.mxu0 0
        %659 = vmatpush.bf16.msra.mxu0 %v651
        %660 = vmatpush.bf16.msra.mxu0 %v455
        %661 = vmatmul.bf16.gmra.mxu0 %v645
        %v662 = vpop.f32.mrf.mxu0
        %v663 = vadd.f32 0.0, %v662
        %v664 = vpop.f32.mrf.mxu0
        %v665 = vadd.f32 0.0, %v664
        %666 = vmatmul.bf16.gmra.mxu0 %v648
        %v667 = vpop.f32.mrf.mxu0
        %v668 = vadd.f32 0.0, %v667
        %v669 = vpop.f32.mrf.mxu0
        %670 = vdwg.mxu0
        %v671 = vpack.c.bf16 %v665, %v663
        %v672 = vpack.c.bf16 %v668, %v668
        %v673 = vld [vmem:[%s427] sm:$0xf]
        %v674 = vld [vmem:[%s427 + $0x4] sm:$0xf]
        %v675 = vld [vmem:[%s427 + $0x8] sm:$0xf]
        %v676 = vld [vmem:[%s427 + $0xc] sm:$0xf]
        %v677 = vld [vmem:[%s427 + $0x10] sm:$0xf]
        %v678 = vld [vmem:[%s427 + $0x14] sm:$0xf]
        %v679 = vld [vmem:[%s427 + $0x18] sm:$0xf]
        %v680 = vld [vmem:[%s427 + $0x1c] sm:$0xf]
        %v689 = vunpack.c.l.b16 %v673
        %v690 = vunpack.c.l.b16 %v674
        %v691 = vunpack.c.l.b16 %v675
        %v692 = vunpack.c.l.b16 %v676
        %v693 = vunpack.c.l.b16 %v677
        %v694 = vunpack.c.l.b16 %v678
        %v695 = vunpack.c.l.b16 %v679
        %v696 = vunpack.c.l.b16 %v680
        %v697 = vpack.c.b16 %v690, %v689
        %v698 = vpack.c.b16 %v692, %v691
        %v699 = vpack.c.b16 %v694, %v693
        %v700 = vpack.c.b16 %v696, %v695
        %v706 = vsel %vm493, %v671, 0
        %v709 = vsel %vm493, %v672, 0
        %711 = vmatpush.bf16.msra.mxu0 0
        %712 = vmatpush.bf16.msra.mxu0 0
        %713 = vmatpush.bf16.msra.mxu0 0
        %714 = vmatpush.bf16.msra.mxu0 0
        %715 = vmatpush.bf16.msra.mxu0 %v700
        %716 = vmatpush.bf16.msra.mxu0 %v699
        %717 = vmatpush.bf16.msra.mxu0 %v698
        %718 = vmatpush.bf16.msra.mxu0 %v697
        %719 = vmatmul.bf16.gmra.mxu0 %v706
        %v720 = vpop.f32.mrf.mxu0
        %v721 = vadd.f32 0.0, %v720
        %v722 = vpop.f32.mrf.mxu0
        %v723 = vadd.f32 0.0, %v722
        %724 = vmatmul.bf16.gmra.mxu0 %v709
        %v725 = vpop.f32.mrf.mxu0
        %v726 = vadd.f32 0.0, %v725
        %v727 = vpop.f32.mrf.mxu0
        %728 = vdwg.mxu0
        %v729 = vsel %vm493, %v721, 0.0
        %v730 = vsel %vm493, %v723, 0.0
        %v731 = vadd.f32 %v729, %v730
        %v732 = vsel %vm493, %v726, 0.0
        %v733 = vadd.f32 %v731, %v732
        %734 = vadd.xlane.f32.xlu0 %v733
        %v735 = vpop.xlane.xlu0 %734
        %v736 = vrot.slane %v735, 4
        %v737 = vadd.f32 %v735, %v736
        %v738 = vrot.slane %v737, 2
        %v739 = vadd.f32 %v737, %v738
        %v740 = vrot.slane %v739, 1
        %v741 = vadd.f32 %v739, %v740
        %s742 = vtos %v741
        %v743 = vstv %s742
        %v744 = vrcp.pop 1536.0
        %v745 = vmul.f32 1536.0, %v744
        %v746 = vsub.f32 1.0, %v745
        %v747 = vmul.f32 %v744, %v746
        %v748 = vadd.f32 %v744, %v747
        %vm749 = vweird.f32 %v744
        %v750 = vsel %vm749, %v744, %v748
        %v751 = vmul.f32 %v743, %v750
        %v752 = vsub.f32 %v721, %v751
        %v753 = vsub.f32 %v723, %v751
        %v754 = vsub.f32 %v726, %v751
        %v755 = vmul.f32 %v752, %v752
        %v756 = vmul.f32 %v753, %v753
        %v757 = vmul.f32 %v754, %v754
        %v758 = vsel %vm493, %v755, 0.0
        %v759 = vsel %vm493, %v756, 0.0
        %v760 = vadd.f32 %v758, %v759
        %v761 = vsel %vm493, %v757, 0.0
        %v762 = vadd.f32 %v760, %v761
        %763 = vadd.xlane.f32.xlu0 %v762
        %v764 = vpop.xlane.xlu0 %763
        %v765 = vrot.slane %v764, 4
        %v766 = vadd.f32 %v764, %v765
        %v767 = vrot.slane %v766, 2
        %v768 = vadd.f32 %v766, %v767
        %v769 = vrot.slane %v768, 1
        %v770 = vadd.f32 %v768, %v769
        %s771 = vtos %v770
        %v772 = vstv %s771
        %v773 = vmul.f32 %v772, %v750
        %v774 = vadd.f32 %v773, 1e-05
        %v775 = vrsqrt.pop %v774
        %v776 = vmul.f32 %v775, %v774
        %v777 = vmul.f32 %v776, %v775
        %v778 = vmul.f32 0.5, %v777
        %v779 = vsub.f32 1.5, %v778
        %v780 = vmul.f32 %v775, %v779
        %vm781 = vweird.f32 %v774
        %vm782 = vweird.f32 %v775
        %vm783 = vmor %vm781, %vm782
        %v784 = vsel %vm783, %v775, %v780
        %v785 = vmul.f32 %v752, %v784
        %v786 = vmul.f32 %v753, %v784
        %v787 = vmul.f32 %v754, %v784
        %v788 = vld [vmem:[#allocation2] sm:$0xff]
        %v789 = vld [vmem:[#allocation2 + $0x8] sm:$0xff]
        %v790 = vld [vmem:[#allocation2 + $0x10] sm:$0xff]
        %v791 = vld [vmem:[%s432] sm:$0xff]
        %v792 = vld [vmem:[%s432 + $0x8] sm:$0xff]
        %v793 = vld [vmem:[%s432 + $0x10] sm:$0xff]
        %v794 = vmul.f32 %v785, %v791
        %v795 = vmul.f32 %v786, %v792
        %v796 = vmul.f32 %v787, %v793
        %v797 = vld [vmem:[%s437] sm:$0xff]
        %v798 = vld [vmem:[%s437 + $0x8] sm:$0xff]
        %v799 = vld [vmem:[%s437 + $0x10] sm:$0xff]
        %v800 = vadd.f32 %v794, %v797
        %v801 = vadd.f32 %v795, %v798
        %v802 = vadd.f32 %v796, %v799
        %v803 = vmax.f32 %v800, 0.0
        %v804 = vmax.f32 %v801, 0.0
        %v805 = vmax.f32 %v802, 0.0
        %v806 = vadd.f32 %v788, %v803
        %v807 = vadd.f32 %v789, %v804
        %v808 = vadd.f32 %v790, %v805
        %809 = vst.msk [vmem:[#allocation2] sm:$0xff] %vm493, %v806
        %810 = vst.msk [vmem:[#allocation2 + $0x8] sm:$0xff] %vm493, %v807
        %811 = vst.msk [vmem:[#allocation2 + $0x10] sm:$0xff] %vm493, %v808
        %p812 = scmp.eq.s32.totalorder %s28, 1
        // Predicated region
        $region53: #{gcnnet_volleyball_forward.4} parent=47 // pred_check
          %p813 = pneg %p812
        $region54: #{gcnnet_volleyball_forward.4} parent=47 // pred_check_branch
          %815 = sbr.rel (%p813) target = $region56
        $region55: #{gcnnet_volleyball_forward.4} parent=47 // pred_region
          %v816 = vld [vmem:[#allocation2] sm:$0xff]
          %v817 = vld [vmem:[#allocation2 + $0x8] sm:$0xff]
          %v818 = vld [vmem:[#allocation2 + $0x10] sm:$0xff]
          %819 = vst.msk [vmem:[%s442] sm:$0xff] %vm493, %v816
          %820 = vst.msk [vmem:[%s442 + $0x8] sm:$0xff] %vm493, %v817
          %821 = vst.msk [vmem:[%s442 + $0x10] sm:$0xff] %vm493, %v818
          %v822 = vsel %vm569, %v611, 0.0
          %v823 = vsel %vm569, %v626, 0.0
          %v824 = vsel %vm569, %v641, 0.0
          %825 = vst [vmem:[%s404] sm:$0xff] %v822
          %826 = vst [vmem:[%s404 + $0x8] sm:$0xff] %v823
          %827 = vst [vmem:[%s404 + $0x10] sm:$0xff] %v824
        $region56: #{gcnnet_volleyball_forward.4} parent=47 // pred_fallthru
          _
        %p828 = scmp.lt.s32.totalorder %s27, 1
        %s829 = scalar_select %p828, %s27, 1
        %s830 = smul.addr %s829, 3
        %s831 = smul.addr %s830, 8
        %s832 = scalar_lea.vmem %s7, %s831
        %s833 = sand.u32 %s251, 1
        %s834 = scalar_lea.sflag [#allocation4], %s833
        %s835 = sand.u32 %s251, 1
        %s836 = smul.addr %s835, 24
        %s837 = scalar_lea.vmem [#allocation3], %s836
        // Predicated region
        $region57: #{gcnnet_volleyball_forward.4} parent=47 // pred_check
          %p838 = pneg %p235
        $region58: #{gcnnet_volleyball_forward.4} parent=47 // pred_check_branch
          %840 = sbr.rel (%p838) target = $region60
        $region59: #{gcnnet_volleyball_forward.4} parent=47 // pred_region
          _
        $region60: #{gcnnet_volleyball_forward.4} parent=47 // pred_fallthru
          _
        // Predicated region
        $region61: #{gcnnet_volleyball_forward.4} parent=47 // pred_check
          %p841 = pneg %p261
        $region62: #{gcnnet_volleyball_forward.4} parent=47 // pred_check_branch
          %843 = sbr.rel (%p841) target = $region64
        $region63: #{gcnnet_volleyball_forward.4} parent=47 // pred_region
          %845 = vsyncadd %s834, 0
          %s846 = smul.addr %s27, 3
          %s847 = smul.addr %s846, 8
          %s848 = scalar_lea.hbm %s8, %s847
          %s849 = sshll.u32 %s837, 4
          %s850 = int_to_ptr.vmem [resolvable:$true] %s849
          %s851 = sshll.u32 %s848, 4
          %s852 = int_to_ptr.hbm [resolvable:$true] %s851
          %857 = dma.vmem_to_hbm [thread:$0]  %s850, 384, %s852, %s834, 128, 128, 8
        $region64: #{gcnnet_volleyball_forward.4} parent=47 // pred_fallthru
          _
      $region48: #{gcnnet_volleyball_forward.4} parent=5 // pred_fallthru
        _
      %p858 = scmp.le.s32.totalorder 2, %s18
      // Predicated region
      $region65: #{gcnnet_volleyball_forward.4} parent=5 // pred_check
        %p859 = pneg %p858
      $region66: #{gcnnet_volleyball_forward.4} parent=5 // pred_check_branch
        %861 = sbr.rel (%p859) target = $region68
      $region67: #{gcnnet_volleyball_forward.4} parent=5 // pred_region
        %s862 = ssub.s32 %s18, 2
        // Predicated region
        $region69: #{gcnnet_volleyball_forward.4} parent=67 // pred_check
          %p863 = pneg %p241
        $region70: #{gcnnet_volleyball_forward.4} parent=67 // pred_check_branch
          %865 = sbr.rel (%p863) target = $region72
        $region71: #{gcnnet_volleyball_forward.4} parent=67 // pred_region
          %p866 = scmp.lt.s32.totalorder %s29, 1
          %s867 = scalar_select %p866, %s29, 1
          %s868 = smul.addr %s867, 3
          %s869 = smul.addr %s868, 8
          %s870 = scalar_lea.vmem %s7, %s869
        $region72: #{gcnnet_volleyball_forward.4} parent=67 // pred_fallthru
          _
        // Predicated region
        $region73: #{gcnnet_volleyball_forward.4} parent=67 // pred_check
          %p871 = pneg %p267
        $region74: #{gcnnet_volleyball_forward.4} parent=67 // pred_check_branch
          %873 = sbr.rel (%p871) target = $region76
        $region75: #{gcnnet_volleyball_forward.4} parent=67 // pred_region
          %s874 = sand.u32 %s252, 1
          %s875 = scalar_lea.sflag [#allocation4], %s874
          %s876 = sand.u32 %s252, 1
          %s877 = smul.addr %s876, 24
          %s878 = scalar_lea.vmem [#allocation3], %s877
          %880 = dma.done %s875, 384
        $region76: #{gcnnet_volleyball_forward.4} parent=67 // pred_fallthru
          _
      $region68: #{gcnnet_volleyball_forward.4} parent=5 // pred_fallthru
        _
    $region6: #{gcnnet_volleyball_forward.4} parent=1 // loop_footer
      %s22 = sadd.s32 1, %s18
    $region7: #{gcnnet_volleyball_forward.4} parent=1 // loop_footer_branch
      %17 = sbr.rel target = $region3
    $region8: #{gcnnet_volleyball_forward.4} parent=1 // loop_exit
      _
    %881 = vsyncpa [#allocation4], 1
    %s882 = scalar_lea.sflag [#allocation4], 1
    %883 = vsyncpa %s882, 1

// kernel: gcnnet_volleyball_forward.3
$region0: #{gcnnet_volleyball_forward.3}
  #allocation0 [shape = 'u32[]', space=smem, size = 0x4, offset = 0x4, fixed_abs, tag = 'smem constant byte address 0x4 - core index']
  #allocation1 [shape = 'u32[72,128]{1,0:T(1,128)}', space=vmem, size = 0x9000, scoped, tag = 'internal scratch']
  #allocation2 [shape = 'f32[24,64]{1,0:T(8,128)}', space=vmem, size = 0x3000, scoped, tag = 'scratch operand']
  %s0 = inlined_call_operand.vmem [shape: bf16[2,24,64], index: 0, kind: input, shape index: {}]
  %s1 = inlined_call_operand.vmem [shape: bf16[64,64], index: 1, kind: input, shape index: {}]
  %s2 = inlined_call_operand.vmem [shape: f32[1,64], index: 2, kind: input, shape index: {}]
  %s3 = inlined_call_operand.vmem [shape: f32[1,64], index: 3, kind: input, shape index: {}]
  %s4 = inlined_call_operand.vmem [shape: f32[1,64], index: 4, kind: input, shape index: {}]
  %s5 = inlined_call_operand.vmem [shape: f32[2,24,64], index: 5, kind: output, shape index: {}]
  %s6 = sld [smem:[#allocation0]]
  $region61: #{gcnnet_volleyball_forward.3} parent=0
    _
  %s8 = ssub.s32 1, %s6
  %s9 = scalar_select 0, %s8, %s6
  loop: start=0, step=1, limit=4
  $region2: #{gcnnet_volleyball_forward.3} parent=0 // loop_pre_header
    _
  $region3: #{gcnnet_volleyball_forward.3} parent=0 // loop_header
    %s11 = sphi 0, %s15
    %p12 = scmp.ge.s32.totalorder %s11, 4
    %s18 = sphi 0, %s30
    %s19 = sphi 0, %s26
    %s20 = sphi 0, %s18
    %s21 = sphi 0, %s19
    %s22 = sphi 0, %s20
    %s23 = sphi 0, %s21
    %s35 = sphi 0, %s37
    %s38 = sphi 0, %s35
    %s39 = sphi 0, %s38
    %s55 = sphi 0, %s39
    %s61 = sphi 0, %s63
    %s64 = sphi 0, %s61
    %s65 = sphi 0, %s64
    %s81 = sphi 0, %s65
    %s85 = sphi 0, %s85
    %s87 = sphi 0, %s85
    %s88 = sphi 0, %s87
    %s102 = sphi 0, %s88
    %s106 = sphi 0, %s106
    %s108 = sphi 0, %s106
    %s109 = sphi 0, %s108
    %s123 = sphi 0, %s109
    %s127 = sphi 0, %s127
    %s129 = sphi 0, %s127
    %s130 = sphi 0, %s129
    %s144 = sphi 0, %s130
    %s150 = sphi 0, %s152
    %s153 = sphi 0, %s150
    %s154 = sphi 0, %s153
    %s170 = sphi 0, %s154
  $region4: #{gcnnet_volleyball_forward.3} parent=0 // loop_header_branch
    %14 = sbr.rel (%p12) target = $region8
  $region5: #{gcnnet_volleyball_forward.3} parent=0 // loop_body
    %s16 = ssub.s32 %s11, 1
    %s17 = ssub.s32 %s11, 2
    %s24 = sadd.s32 1, %s19
    %p25 = scmp.ge.s32.totalorder %s24, 1
    %s26 = scalar_select %p25, 0, %s24
    %s27 = sadd.s32 1, %s18
    %s28 = scalar_select %p25, %s27, %s18
    %p29 = scmp.ge.s32.totalorder %s28, 2
    %s30 = scalar_select %p29, 0, %s28
    %s31 = ssub.s32 %s18, %s30
    %s32 = ssub.s32 %s19, %s26
    %s33 = sor.u32 %s31, %s32
    %p34 = scmp.eq.s32.totalorder %s33, 0
    %s36 = sadd.s32 %s35, 1
    %s37 = scalar_select %p34, %s35, %s36
    %p40 = pneg %p34
    %p41 = scmp.eq.s32.totalorder %s11, 1
    %p42 = por %p40, %p41
    %p43 = scmp.ne.s32.totalorder %s35, %s38
    %p44 = scmp.eq.s32.totalorder %s11, 0
    %p45 = por %p43, %p44
    %p46 = scmp.ne.s32.totalorder %s35, %s38
    %p47 = scmp.eq.s32.totalorder %s16, 1
    %p48 = por %p46, %p47
    %p49 = scmp.ne.s32.totalorder %s38, %s39
    %p50 = scmp.eq.s32.totalorder %s16, 0
    %p51 = por %p49, %p50
    %p52 = scmp.ne.s32.totalorder %s38, %s39
    %p53 = scmp.eq.s32.totalorder %s17, 1
    %p54 = por %p52, %p53
    %p56 = scmp.ne.s32.totalorder %s39, %s55
    %p57 = scmp.eq.s32.totalorder %s17, 0
    %p58 = por %p56, %p57
    %s59 = ssub.s32 %s19, %s26
    %p60 = scmp.eq.s32.totalorder %s59, 0
    %s62 = sadd.s32 %s61, 1
    %s63 = scalar_select %p60, %s61, %s62
    %p66 = pneg %p60
    %p67 = scmp.eq.s32.totalorder %s11, 1
    %p68 = por %p66, %p67
    %p69 = scmp.ne.s32.totalorder %s61, %s64
    %p70 = scmp.eq.s32.totalorder %s11, 0
    %p71 = por %p69, %p70
    %p72 = scmp.ne.s32.totalorder %s61, %s64
    %p73 = scmp.eq.s32.totalorder %s16, 1
    %p74 = por %p72, %p73
    %p75 = scmp.ne.s32.totalorder %s64, %s65
    %p76 = scmp.eq.s32.totalorder %s16, 0
    %p77 = por %p75, %p76
    %p78 = scmp.ne.s32.totalorder %s64, %s65
    %p79 = scmp.eq.s32.totalorder %s17, 1
    %p80 = por %p78, %p79
    %p82 = scmp.ne.s32.totalorder %s65, %s81
    %p83 = scmp.eq.s32.totalorder %s17, 0
    %p84 = por %p82, %p83
    %s86 = sadd.s32 %s85, 1
    %p89 = scmp.eq.s32.totalorder %s11, 1
    %p90 = scmp.ne.s32.totalorder %s85, %s87
    %p91 = scmp.eq.s32.totalorder %s11, 0
    %p92 = por %p90, %p91
    %p93 = scmp.ne.s32.totalorder %s85, %s87
    %p94 = scmp.eq.s32.totalorder %s16, 1
    %p95 = por %p93, %p94
    %p96 = scmp.ne.s32.totalorder %s87, %s88
    %p97 = scmp.eq.s32.totalorder %s16, 0
    %p98 = por %p96, %p97
    %p99 = scmp.ne.s32.totalorder %s87, %s88
    %p100 = scmp.eq.s32.totalorder %s17, 1
    %p101 = por %p99, %p100
    %p103 = scmp.ne.s32.totalorder %s88, %s102
    %p104 = scmp.eq.s32.totalorder %s17, 0
    %p105 = por %p103, %p104
    %s107 = sadd.s32 %s106, 1
    %p110 = scmp.eq.s32.totalorder %s11, 1
    %p111 = scmp.ne.s32.totalorder %s106, %s108
    %p112 = scmp.eq.s32.totalorder %s11, 0
    %p113 = por %p111, %p112
    %p114 = scmp.ne.s32.totalorder %s106, %s108
    %p115 = scmp.eq.s32.totalorder %s16, 1
    %p116 = por %p114, %p115
    %p117 = scmp.ne.s32.totalorder %s108, %s109
    %p118 = scmp.eq.s32.totalorder %s16, 0
    %p119 = por %p117, %p118
    %p120 = scmp.ne.s32.totalorder %s108, %s109
    %p121 = scmp.eq.s32.totalorder %s17, 1
    %p122 = por %p120, %p121
    %p124 = scmp.ne.s32.totalorder %s109, %s123
    %p125 = scmp.eq.s32.totalorder %s17, 0
    %p126 = por %p124, %p125
    %s128 = sadd.s32 %s127, 1
    %p131 = scmp.eq.s32.totalorder %s11, 1
    %p132 = scmp.ne.s32.totalorder %s127, %s129
    %p133 = scmp.eq.s32.totalorder %s11, 0
    %p134 = por %p132, %p133
    %p135 = scmp.ne.s32.totalorder %s127, %s129
    %p136 = scmp.eq.s32.totalorder %s16, 1
    %p137 = por %p135, %p136
    %p138 = scmp.ne.s32.totalorder %s129, %s130
    %p139 = scmp.eq.s32.totalorder %s16, 0
    %p140 = por %p138, %p139
    %p141 = scmp.ne.s32.totalorder %s129, %s130
    %p142 = scmp.eq.s32.totalorder %s17, 1
    %p143 = por %p141, %p142
    %p145 = scmp.ne.s32.totalorder %s130, %s144
    %p146 = scmp.eq.s32.totalorder %s17, 0
    %p147 = por %p145, %p146
    %s148 = ssub.s32 %s18, %s30
    %p149 = scmp.eq.s32.totalorder %s148, 0
    %s151 = sadd.s32 %s150, 1
    %s152 = scalar_select %p149, %s150, %s151
    %p155 = pneg %p149
    %p156 = scmp.eq.s32.totalorder %s11, 1
    %p157 = por %p155, %p156
    %p158 = scmp.ne.s32.totalorder %s150, %s153
    %p159 = scmp.eq.s32.totalorder %s11, 0
    %p160 = por %p158, %p159
    %p161 = scmp.ne.s32.totalorder %s150, %s153
    %p162 = scmp.eq.s32.totalorder %s16, 1
    %p163 = por %p161, %p162
    %p164 = scmp.ne.s32.totalorder %s153, %s154
    %p165 = scmp.eq.s32.totalorder %s16, 0
    %p166 = por %p164, %p165
    %p167 = scmp.ne.s32.totalorder %s153, %s154
    %p168 = scmp.eq.s32.totalorder %s17, 1
    %p169 = por %p167, %p168
    %p171 = scmp.ne.s32.totalorder %s154, %s170
    %p172 = scmp.eq.s32.totalorder %s17, 0
    %p173 = por %p171, %p172
    %p174 = scmp.le.s32.totalorder 1, %s11
    %p175 = scmp.lt.s32.totalorder %s11, 3
    %p176 = pnand %p174, %p175
    %p177 = pneg %p176
    // Predicated region
    $region9: #{gcnnet_volleyball_forward.3} parent=5 // pred_check
      _
    $region10: #{gcnnet_volleyball_forward.3} parent=5 // pred_check_branch
      %179 = sbr.rel (%p176) target = $region12
    $region11: #{gcnnet_volleyball_forward.3} parent=5 // pred_region
      %s180 = ssub.s32 %s11, 1
      // Predicated region
      $region13: #{gcnnet_volleyball_forward.3} parent=11 // pred_check
        %p181 = pneg %p77
      $region14: #{gcnnet_volleyball_forward.3} parent=11 // pred_check_branch
        %183 = sbr.rel (%p181) target = $region16
      $region15: #{gcnnet_volleyball_forward.3} parent=11 // pred_region
        %s184 = smul.u32 8, %s21
        %p185 = scmp.lt.s32.totalorder %s184, 7
        %s186 = scalar_select %p185, %s184, 7
        %s187 = smul.addr %s186, 4
        %s188 = scalar_lea.vmem %s1, %s187
        %s189 = smul.u32 8, %s21
      $region16: #{gcnnet_volleyball_forward.3} parent=11 // pred_fallthru
        _
      // Predicated region
      $region17: #{gcnnet_volleyball_forward.3} parent=11 // pred_check
        %p190 = pneg %p98
      $region18: #{gcnnet_volleyball_forward.3} parent=11 // pred_check_branch
        %192 = sbr.rel (%p190) target = $region20
      $region19: #{gcnnet_volleyball_forward.3} parent=11 // pred_region
        _
      $region20: #{gcnnet_volleyball_forward.3} parent=11 // pred_fallthru
        _
      // Predicated region
      $region21: #{gcnnet_volleyball_forward.3} parent=11 // pred_check
        %p193 = pneg %p119
      $region22: #{gcnnet_volleyball_forward.3} parent=11 // pred_check_branch
        %195 = sbr.rel (%p193) target = $region24
      $region23: #{gcnnet_volleyball_forward.3} parent=11 // pred_region
        _
      $region24: #{gcnnet_volleyball_forward.3} parent=11 // pred_fallthru
        _
      // Predicated region
      $region25: #{gcnnet_volleyball_forward.3} parent=11 // pred_check
        %p196 = pneg %p140
      $region26: #{gcnnet_volleyball_forward.3} parent=11 // pred_check_branch
        %198 = sbr.rel (%p196) target = $region28
      $region27: #{gcnnet_volleyball_forward.3} parent=11 // pred_region
        _
      $region28: #{gcnnet_volleyball_forward.3} parent=11 // pred_fallthru
        _
    $region12: #{gcnnet_volleyball_forward.3} parent=5 // pred_fallthru
      _
    %p199 = scmp.lt.s32.totalorder %s11, 2
    // Predicated region
    $region29: #{gcnnet_volleyball_forward.3} parent=5 // pred_check
      %p200 = pneg %p199
    $region30: #{gcnnet_volleyball_forward.3} parent=5 // pred_check_branch
      %202 = sbr.rel (%p200) target = $region32
    $region31: #{gcnnet_volleyball_forward.3} parent=5 // pred_region
      // Predicated region
      $region33: #{gcnnet_volleyball_forward.3} parent=31 // pred_check
        %p203 = pneg %p45
      $region34: #{gcnnet_volleyball_forward.3} parent=31 // pred_check_branch
        %205 = sbr.rel (%p203) target = $region36
      $region35: #{gcnnet_volleyball_forward.3} parent=31 // pred_region
        %p206 = scmp.lt.s32.totalorder %s18, 1
        %s207 = scalar_select %p206, %s18, 1
        %p208 = scmp.lt.s32.totalorder %s19, 0
        %s209 = scalar_select %p208, %s19, 0
        %s210 = smul.addr %s207, 3
        %s211 = sadd.s32 %s209, %s210
        %s212 = smul.addr %s211, 4
        %s213 = scalar_lea.vmem %s0, %s212
      $region36: #{gcnnet_volleyball_forward.3} parent=31 // pred_fallthru
        _
    $region32: #{gcnnet_volleyball_forward.3} parent=5 // pred_fallthru
      _
    %p214 = scmp.le.s32.totalorder 1, %s11
    %p215 = scmp.lt.s32.totalorder %s11, 3
    %p216 = pnand %p214, %p215
    %p217 = pneg %p216
    // Predicated region
    $region37: #{gcnnet_volleyball_forward.3} parent=5 // pred_check
      _
    $region38: #{gcnnet_volleyball_forward.3} parent=5 // pred_check_branch
      %219 = sbr.rel (%p216) target = $region40
    $region39: #{gcnnet_volleyball_forward.3} parent=5 // pred_region
      %s220 = ssub.s32 %s11, 1
      %p221 = scmp.lt.s32.totalorder %s20, 1
      %s222 = scalar_select %p221, %s20, 1
      %p223 = scmp.lt.s32.totalorder %s21, 0
      %s224 = scalar_select %p223, %s21, 0
      %s225 = smul.addr %s222, 3
      %s226 = sadd.s32 %s224, %s225
      %s227 = smul.addr %s226, 4
      %s228 = scalar_lea.vmem %s0, %s227
      %p229 = pneg %p51
      %p230 = pneg %p48
      %s231 = smul.u32 8, %s21
      %p232 = scmp.lt.s32.totalorder %s231, 7
      %s233 = scalar_select %p232, %s231, 7
      %s234 = smul.addr %s233, 4
      %s235 = scalar_lea.vmem %s1, %s234
      %p236 = pneg %p77
      %p237 = pneg %p74
      %p238 = pneg %p98
      %p239 = pneg %p95
      %p240 = pneg %p119
      %p241 = pneg %p116
      %p242 = pneg %p140
      %p243 = pneg %p137
      %p244 = pneg %p166
      %p245 = pneg %p163
      %p246 = scmp.lt.s32.totalorder %s20, 1
      %s247 = scalar_select %p246, %s20, 1
      %s248 = smul.addr %s247, 3
      %s249 = smul.addr %s248, 8
      %s250 = scalar_lea.vmem %s5, %s249
      %p251 = scmp.lt.s32.totalorder %s20, 1
      %s252 = scalar_select %p251, %s20, 1
      %p253 = scmp.lt.s32.totalorder %s21, 0
      %s254 = scalar_select %p253, %s21, 0
      %s255 = smul.addr %s252, 3
      %s256 = sadd.s32 %s254, %s255
      %s257 = smul.addr %s256, 4
      %s258 = scalar_lea.vmem %s0, %s257
      %s259 = smul.u32 8, %s21
      %p260 = scmp.lt.s32.totalorder %s259, 7
      %s261 = scalar_select %p260, %s259, 7
      %s262 = smul.addr %s261, 4
      %s263 = scalar_lea.vmem %s1, %s262
      %s264 = smul.u32 8, %s21
      %p265 = scmp.lt.s32.totalorder %s20, 1
      %s266 = scalar_select %p265, %s20, 1
      %s267 = smul.addr %s266, 3
      %s268 = smul.addr %s267, 8
      %s269 = scalar_lea.vmem %s5, %s268
      %p271 = scmp.eq.s32.totalorder %s21, 0
      // Predicated region
      $region41: #{gcnnet_volleyball_forward.3} parent=39 // pred_check
        %p272 = pneg %p271
      $region42: #{gcnnet_volleyball_forward.3} parent=39 // pred_check_branch
        %274 = sbr.rel (%p272) target = $region44
      $region43: #{gcnnet_volleyball_forward.3} parent=39 // pred_region
        %vm275 = vcmask 523264
        %276 = vst.msk [vmem:[#allocation2] sm:$0xff] %vm275, 0.0
        %277 = vst.msk [vmem:[#allocation2 + $0x8] sm:$0xff] %vm275, 0.0
        %278 = vst.msk [vmem:[#allocation2 + $0x10] sm:$0xff] %vm275, 0.0
      $region44: #{gcnnet_volleyball_forward.3} parent=39 // pred_fallthru
        _
      %v279 = vld [vmem:[%s258] sm:$0xf]
      %v280 = vld [vmem:[%s258 + $0x4] sm:$0xf]
      %v281 = vld [vmem:[%s258 + $0x8] sm:$0xf]
      %v282 = vld [vmem:[#allocation2] sm:$0xff]
      %v283 = vld [vmem:[#allocation2 + $0x8] sm:$0xff]
      %v284 = vld [vmem:[#allocation2 + $0x10] sm:$0xff]
      %v285 = vld [vmem:[%s263] sm:$0xf]
      %v286 = vld [vmem:[%s263 + $0x4] sm:$0xf]
      %v287 = vld [vmem:[%s263 + $0x8] sm:$0xf]
      %v288 = vld [vmem:[%s263 + $0xc] sm:$0xf]
      %v289 = vld [vmem:[%s263 + $0x10] sm:$0xf]
      %v290 = vld [vmem:[%s263 + $0x14] sm:$0xf]
      %v291 = vld [vmem:[%s263 + $0x18] sm:$0xf]
      %v292 = vld [vmem:[%s263 + $0x1c] sm:$0xf]
      %v296 = vunpack.c.l.b16 %v279
      %v297 = vunpack.c.l.b16 %v280
      %v298 = vunpack.c.l.b16 %v281
      %v299 = vpack.c.b16 %v297, %v296
      %v300 = vpack.c.b16 %v298, %v298
      %v309 = vunpack.c.l.b16 %v285
      %v310 = vunpack.c.l.b16 %v286
      %v311 = vunpack.c.l.b16 %v287
      %v312 = vunpack.c.l.b16 %v288
      %v313 = vunpack.c.l.b16 %v289
      %v314 = vunpack.c.l.b16 %v290
      %v315 = vunpack.c.l.b16 %v291
      %v316 = vunpack.c.l.b16 %v292
      %v317 = vpack.c.b16 %v310, %v309
      %v318 = vpack.c.b16 %v312, %v311
      %v319 = vpack.c.b16 %v314, %v313
      %v320 = vpack.c.b16 %v316, %v315
      %vm325 = vcmask 523264
      %v327 = vsel %vm325, %v299, 0
      %v330 = vsel %vm325, %v300, 0
      %332 = vmatpush.bf16.msra.mxu0 0
      %333 = vmatpush.bf16.msra.mxu0 0
      %334 = vmatpush.bf16.msra.mxu0 0
      %335 = vmatpush.bf16.msra.mxu0 0
      %336 = vmatpush.bf16.msra.mxu0 %v320
      %337 = vmatpush.bf16.msra.mxu0 %v319
      %338 = vmatpush.bf16.msra.mxu0 %v318
      %339 = vmatpush.bf16.msra.mxu0 %v317
      %340 = vmatmul.bf16.gmra.mxu0 %v327
      %v341 = vpop.f32.mrf.mxu0
      %v342 = vadd.f32 0.0, %v341
      %v343 = vpop.f32.mrf.mxu0
      %v344 = vadd.f32 0.0, %v343
      %345 = vmatmul.bf16.gmra.mxu0 %v330
      %v346 = vpop.f32.mrf.mxu0
      %v347 = vadd.f32 0.0, %v346
      %v348 = vpop.f32.mrf.mxu0
      %349 = vdwg.mxu0
      %v350 = vadd.f32 %v282, %v342
      %v351 = vadd.f32 %v283, %v344
      %v352 = vadd.f32 %v284, %v347
      %353 = vst.msk [vmem:[#allocation2] sm:$0xff] %vm325, %v350
      %354 = vst.msk [vmem:[#allocation2 + $0x8] sm:$0xff] %vm325, %v351
      %355 = vst.msk [vmem:[#allocation2 + $0x10] sm:$0xff] %vm325, %v352
      // Predicated region
      $region45: #{gcnnet_volleyball_forward.3} parent=39 // pred_check
        %p356 = pneg %p271
      $region46: #{gcnnet_volleyball_forward.3} parent=39 // pred_check_branch
        %358 = sbr.rel (%p356) target = $region48
      $region47: #{gcnnet_volleyball_forward.3} parent=39 // pred_region
        %v359 = vld [vmem:[#allocation2] sm:$0xff]
        %v360 = vld [vmem:[#allocation2 + $0x8] sm:$0xff]
        %v361 = vld [vmem:[#allocation2 + $0x10] sm:$0xff]
        %v362 = vld [vmem:[%s2] sm:$0x1]
        %v364 = vperm.slane %v362, 0
        %v366 = vadd.f32 %v359, %v364
        %v367 = vadd.f32 %v360, %v364
        %v368 = vadd.f32 %v361, %v364
        %v369 = vsel %vm325, %v366, 0.0
        %370 = vadd.xlane.f32.xlu0 %v369
        %v371 = vpop.xlane.xlu0 %370
        %v372 = vsel %vm325, %v367, 0.0
        %373 = vadd.xlane.f32.xlu0 %v372
        %v374 = vpop.xlane.xlu0 %373
        %v375 = vsel %vm325, %v368, 0.0
        %376 = vadd.xlane.f32.xlu0 %v375
        %v377 = vpop.xlane.xlu0 %376
        %v378 = vrcp.pop 64.0
        %v379 = vmul.f32 64.0, %v378
        %v380 = vsub.f32 1.0, %v379
        %v381 = vmul.f32 %v378, %v380
        %v382 = vadd.f32 %v378, %v381
        %vm383 = vweird.f32 %v378
        %v384 = vsel %vm383, %v378, %v382
        %v385 = vmul.f32 %v371, %v384
        %v386 = vmul.f32 %v374, %v384
        %v387 = vmul.f32 %v377, %v384
        %v388 = vsub.f32 %v366, %v385
        %v389 = vsub.f32 %v367, %v386
        %v390 = vsub.f32 %v368, %v387
        %v391 = vmul.f32 %v388, %v388
        %v392 = vmul.f32 %v389, %v389
        %v393 = vmul.f32 %v390, %v390
        %v394 = vsel %vm325, %v391, 0.0
        %395 = vadd.xlane.f32.xlu0 %v394
        %v396 = vpop.xlane.xlu0 %395
        %v397 = vsel %vm325, %v392, 0.0
        %398 = vadd.xlane.f32.xlu0 %v397
        %v399 = vpop.xlane.xlu0 %398
        %v400 = vsel %vm325, %v393, 0.0
        %401 = vadd.xlane.f32.xlu0 %v400
        %v402 = vpop.xlane.xlu0 %401
        %v403 = vmul.f32 %v396, %v384
        %v404 = vmul.f32 %v399, %v384
        %v405 = vmul.f32 %v402, %v384
        %v406 = vadd.f32 %v403, 1e-05
        %v407 = vadd.f32 %v404, 1e-05
        %v408 = vadd.f32 %v405, 1e-05
        %v409 = vrsqrt.pop %v406
        %v410 = vmul.f32 %v409, %v406
        %v411 = vmul.f32 %v410, %v409
        %v412 = vmul.f32 0.5, %v411
        %v413 = vsub.f32 1.5, %v412
        %v414 = vmul.f32 %v409, %v413
        %vm415 = vweird.f32 %v406
        %vm416 = vweird.f32 %v409
        %vm417 = vmor %vm415, %vm416
        %v418 = vsel %vm417, %v409, %v414
        %v419 = vrsqrt.pop %v407
        %v420 = vmul.f32 %v419, %v407
        %v421 = vmul.f32 %v420, %v419
        %v422 = vmul.f32 0.5, %v421
        %v423 = vsub.f32 1.5, %v422
        %v424 = vmul.f32 %v419, %v423
        %vm425 = vweird.f32 %v407
        %vm426 = vweird.f32 %v419
        %vm427 = vmor %vm425, %vm426
        %v428 = vsel %vm427, %v419, %v424
        %v429 = vrsqrt.pop %v408
        %v430 = vmul.f32 %v429, %v408
        %v431 = vmul.f32 %v430, %v429
        %v432 = vmul.f32 0.5, %v431
        %v433 = vsub.f32 1.5, %v432
        %v434 = vmul.f32 %v429, %v433
        %vm435 = vweird.f32 %v408
        %vm436 = vweird.f32 %v429
        %vm437 = vmor %vm435, %vm436
        %v438 = vsel %vm437, %v429, %v434
        %v439 = vmul.f32 %v388, %v418
        %v440 = vmul.f32 %v389, %v428
        %v441 = vmul.f32 %v390, %v438
        %v442 = vld [vmem:[%s3] sm:$0x1]
        %v444 = vperm.slane %v442, 0
        %v446 = vmul.f32 %v439, %v444
        %v447 = vmul.f32 %v440, %v444
        %v448 = vmul.f32 %v441, %v444
        %v449 = vld [vmem:[%s4] sm:$0x1]
        %v451 = vperm.slane %v449, 0
        %v453 = vadd.f32 %v446, %v451
        %v454 = vadd.f32 %v447, %v451
        %v455 = vadd.f32 %v448, %v451
        %v456 = vmax.f32 %v453, 0.0
        %v457 = vmax.f32 %v454, 0.0
        %v458 = vmax.f32 %v455, 0.0
        %v460 = vsel %vm325, %v456, 0
        %462 = vmatpush.xpose.msra.mxu0 0.0
        %463 = vmatpush.xpose.msra.mxu0 0.0
        %464 = vmatpush.xpose.msra.mxu0 0.0
        %465 = vmatpush.xpose.msra.mxu0 0.0
        %466 = vmatpush.xpose.msra.mxu0 0.0
        %467 = vmatpush.xpose.msra.mxu0 0.0
        %468 = vmatpush.xpose.msra.mxu0 0.0
        %469 = vmatpush.xpose.msra.mxu0 0.0
        %470 = vmatpush.xpose.msra.mxu0 0.0
        %471 = vmatpush.xpose.msra.mxu0 0.0
        %472 = vmatpush.xpose.msra.mxu0 0.0
        %473 = vmatpush.xpose.msra.mxu0 0.0
        %474 = vmatpush.xpose.msra.mxu0 0.0
        %475 = vmatpush.xpose.msra.mxu0 0.0
        %476 = vmatpush.xpose.msra.mxu0 0.0
        %477 = vmatpush.xpose.msra.mxu0 %v460
        %478 = vmatmul.f32.gmra.mxu0 %v460
        %v479 = vpop.f32.mrf.mxu0
        %v480 = vadd.f32 0.0, %v479
        %481 = vdwg.mxu0
        %v483 = vsel %vm325, %v457, 0
        %485 = vmatpush.xpose.msra.mxu0 0.0
        %486 = vmatpush.xpose.msra.mxu0 0.0
        %487 = vmatpush.xpose.msra.mxu0 0.0
        %488 = vmatpush.xpose.msra.mxu0 0.0
        %489 = vmatpush.xpose.msra.mxu0 0.0
        %490 = vmatpush.xpose.msra.mxu0 0.0
        %491 = vmatpush.xpose.msra.mxu0 0.0
        %492 = vmatpush.xpose.msra.mxu0 0.0
        %493 = vmatpush.xpose.msra.mxu0 0.0
        %494 = vmatpush.xpose.msra.mxu0 0.0
        %495 = vmatpush.xpose.msra.mxu0 0.0
        %496 = vmatpush.xpose.msra.mxu0 0.0
        %497 = vmatpush.xpose.msra.mxu0 0.0
        %498 = vmatpush.xpose.msra.mxu0 0.0
        %499 = vmatpush.xpose.msra.mxu0 0.0
        %500 = vmatpush.xpose.msra.mxu0 %v483
        %501 = vmatmul.f32.gmra.mxu0 %v483
        %v502 = vpop.f32.mrf.mxu0
        %v503 = vadd.f32 0.0, %v502
        %504 = vdwg.mxu0
        %v506 = vsel %vm325, %v458, 0
        %508 = vmatpush.xpose.msra.mxu0 0.0
        %509 = vmatpush.xpose.msra.mxu0 0.0
        %510 = vmatpush.xpose.msra.mxu0 0.0
        %511 = vmatpush.xpose.msra.mxu0 0.0
        %512 = vmatpush.xpose.msra.mxu0 0.0
        %513 = vmatpush.xpose.msra.mxu0 0.0
        %514 = vmatpush.xpose.msra.mxu0 0.0
        %515 = vmatpush.xpose.msra.mxu0 0.0
        %516 = vmatpush.xpose.msra.mxu0 0.0
        %517 = vmatpush.xpose.msra.mxu0 0.0
        %518 = vmatpush.xpose.msra.mxu0 0.0
        %519 = vmatpush.xpose.msra.mxu0 0.0
        %520 = vmatpush.xpose.msra.mxu0 0.0
        %521 = vmatpush.xpose.msra.mxu0 0.0
        %522 = vmatpush.xpose.msra.mxu0 0.0
        %523 = vmatpush.xpose.msra.mxu0 %v506
        %524 = vmatmul.f32.gmra.mxu0 %v506
        %v525 = vpop.f32.mrf.mxu0
        %v526 = vadd.f32 0.0, %v525
        %527 = vdwg.mxu0
        %v528 = vlaneseq
        %v529 = vshrl.u32 %v528, 7
        %v530 = vlaneseq
        %v531 = vand.u32 %v530, 127
        %vm532 = vcmp.eq.s32.totalorder %v529, %v531
        %v533 = vsel %vm532, 1, 0
        %v534 = vcvt.s32.f32 %v533
        %vm535 = vcmask 64512
        %v536 = vsel %vm535, %v480, -inf
        %537 = vmax.xlane.f32.xlu0 %v536
        %v538 = vpop.xlane.xlu0 %537
        %v539 = vsel %vm535, %v503, -inf
        %540 = vmax.xlane.f32.xlu0 %v539
        %v541 = vpop.xlane.xlu0 %540
        %v542 = vsel %vm535, %v526, -inf
        %543 = vmax.xlane.f32.xlu0 %v542
        %v544 = vpop.xlane.xlu0 %543
        %vm545 = vcmp.ge.f32.partialorder %v480, %v538
        %vm546 = vcmp.ge.f32.partialorder %v503, %v541
        %vm547 = vcmp.ge.f32.partialorder %v526, %v544
        %v548 = vsel %vm545, %v531, 8
        %v549 = vsel %vm546, %v531, 8
        %v550 = vsel %vm547, %v531, 8
        %v551 = vsel %vm535, %v548, 2147483647
        %v552 = vand.u32 %v551, 65535
        %v553 = vshra.s32 %v551, 16
        %v554 = vcvt.s32.f32 %v552
        %v555 = vcvt.s32.f32 %v553
        %556 = vmin.xlane.f32.xlu0 %v555
        %v557 = vpop.xlane.xlu0 %556
        %vm558 = vcmp.eq.f32.partialorder %v555, %v557
        %v559 = vsel %vm558, %v554, inf
        %560 = vmin.xlane.f32.xlu0 %v559
        %v561 = vpop.xlane.xlu0 %560
        %v562 = vcvt.f32.s32 %v561
        %v563 = vcvt.f32.s32 %v557
        %v564 = vshll.u32 %v563, 16
        %v565 = vadd.s32 %v564, %v562
        %v566 = vsel %vm535, %v549, 2147483647
        %v567 = vand.u32 %v566, 65535
        %v568 = vshra.s32 %v566, 16
        %v569 = vcvt.s32.f32 %v567
        %v570 = vcvt.s32.f32 %v568
        %571 = vmin.xlane.f32.xlu0 %v570
        %v572 = vpop.xlane.xlu0 %571
        %vm573 = vcmp.eq.f32.partialorder %v570, %v572
        %v574 = vsel %vm573, %v569, inf
        %575 = vmin.xlane.f32.xlu0 %v574
        %v576 = vpop.xlane.xlu0 %575
        %v577 = vcvt.f32.s32 %v576
        %v578 = vcvt.f32.s32 %v572
        %v579 = vshll.u32 %v578, 16
        %v580 = vadd.s32 %v579, %v577
        %v581 = vsel %vm535, %v550, 2147483647
        %v582 = vand.u32 %v581, 65535
        %v583 = vshra.s32 %v581, 16
        %v584 = vcvt.s32.f32 %v582
        %v585 = vcvt.s32.f32 %v583
        %586 = vmin.xlane.f32.xlu0 %v585
        %v587 = vpop.xlane.xlu0 %586
        %vm588 = vcmp.eq.f32.partialorder %v585, %v587
        %v589 = vsel %vm588, %v584, inf
        %590 = vmin.xlane.f32.xlu0 %v589
        %v591 = vpop.xlane.xlu0 %590
        %v592 = vcvt.f32.s32 %v591
        %v593 = vcvt.f32.s32 %v587
        %v594 = vshll.u32 %v593, 16
        %v595 = vadd.s32 %v594, %v592
        %vm596 = vcmp.eq.s32.totalorder %v531, %v565
        %vm597 = vcmp.eq.s32.totalorder %v531, %v580
        %vm598 = vcmp.eq.s32.totalorder %v531, %v595
        %v599 = vsel %vm596, 1, 0
        %v600 = vsel %vm597, 1, 0
        %v601 = vsel %vm598, 1, 0
        %v602 = vcvt.s32.f32 %v599
        %v603 = vcvt.s32.f32 %v600
        %v604 = vcvt.s32.f32 %v601
        %v605 = vadd.f32 %v534, %v602
        %v606 = vadd.f32 %v534, %v603
        %v607 = vadd.f32 %v534, %v604
        %v608 = vsel %vm596, -1e+30, %v480
        %v609 = vsel %vm597, -1e+30, %v503
        %v610 = vsel %vm598, -1e+30, %v526
        %v611 = vsel %vm535, %v608, -inf
        %612 = vmax.xlane.f32.xlu0 %v611
        %v613 = vpop.xlane.xlu0 %612
        %v614 = vsel %vm535, %v609, -inf
        %615 = vmax.xlane.f32.xlu0 %v614
        %v616 = vpop.xlane.xlu0 %615
        %v617 = vsel %vm535, %v610, -inf
        %618 = vmax.xlane.f32.xlu0 %v617
        %v619 = vpop.xlane.xlu0 %618
        %vm620 = vcmp.ge.f32.partialorder %v608, %v613
        %vm621 = vcmp.ge.f32.partialorder %v609, %v616
        %vm622 = vcmp.ge.f32.partialorder %v610, %v619
        %v623 = vsel %vm620, %v531, 8
        %v624 = vsel %vm621, %v531, 8
        %v625 = vsel %vm622, %v531, 8
        %v626 = vsel %vm535, %v623, 2147483647
        %v627 = vand.u32 %v626, 65535
        %v628 = vshra.s32 %v626, 16
        %v629 = vcvt.s32.f32 %v627
        %v630 = vcvt.s32.f32 %v628
        %631 = vmin.xlane.f32.xlu0 %v630
        %v632 = vpop.xlane.xlu0 %631
        %vm633 = vcmp.eq.f32.partialorder %v630, %v632
        %v634 = vsel %vm633, %v629, inf
        %635 = vmin.xlane.f32.xlu0 %v634
        %v636 = vpop.xlane.xlu0 %635
        %v637 = vcvt.f32.s32 %v636
        %v638 = vcvt.f32.s32 %v632
        %v639 = vshll.u32 %v638, 16
        %v640 = vadd.s32 %v639, %v637
        %v641 = vsel %vm535, %v624, 2147483647
        %v642 = vand.u32 %v641, 65535
        %v643 = vshra.s32 %v641, 16
        %v644 = vcvt.s32.f32 %v642
        %v645 = vcvt.s32.f32 %v643
        %646 = vmin.xlane.f32.xlu0 %v645
        %v647 = vpop.xlane.xlu0 %646
        %vm648 = vcmp.eq.f32.partialorder %v645, %v647
        %v649 = vsel %vm648, %v644, inf
        %650 = vmin.xlane.f32.xlu0 %v649
        %v651 = vpop.xlane.xlu0 %650
        %v652 = vcvt.f32.s32 %v651
        %v653 = vcvt.f32.s32 %v647
        %v654 = vshll.u32 %v653, 16
        %v655 = vadd.s32 %v654, %v652
        %v656 = vsel %vm535, %v625, 2147483647
        %v657 = vand.u32 %v656, 65535
        %v658 = vshra.s32 %v656, 16
        %v659 = vcvt.s32.f32 %v657
        %v660 = vcvt.s32.f32 %v658
        %661 = vmin.xlane.f32.xlu0 %v660
        %v662 = vpop.xlane.xlu0 %661
        %vm663 = vcmp.eq.f32.partialorder %v660, %v662
        %v664 = vsel %vm663, %v659, inf
        %665 = vmin.xlane.f32.xlu0 %v664
        %v666 = vpop.xlane.xlu0 %665
        %v667 = vcvt.f32.s32 %v666
        %v668 = vcvt.f32.s32 %v662
        %v669 = vshll.u32 %v668, 16
        %v670 = vadd.s32 %v669, %v667
        %vm671 = vcmp.eq.s32.totalorder %v531, %v640
        %vm672 = vcmp.eq.s32.totalorder %v531, %v655
        %vm673 = vcmp.eq.s32.totalorder %v531, %v670
        %v674 = vsel %vm671, 1, 0
        %v675 = vsel %vm672, 1, 0
        %v676 = vsel %vm673, 1, 0
        %v677 = vcvt.s32.f32 %v674
        %v678 = vcvt.s32.f32 %v675
        %v679 = vcvt.s32.f32 %v676
        %v680 = vadd.f32 %v605, %v677
        %v681 = vadd.f32 %v606, %v678
        %v682 = vadd.f32 %v607, %v679
        %v683 = vsel %vm671, -1e+30, %v608
        %v684 = vsel %vm672, -1e+30, %v609
        %v685 = vsel %vm673, -1e+30, %v610
        %v686 = vsel %vm535, %v683, -inf
        %687 = vmax.xlane.f32.xlu0 %v686
        %v688 = vpop.xlane.xlu0 %687
        %v689 = vsel %vm535, %v684, -inf
        %690 = vmax.xlane.f32.xlu0 %v689
        %v691 = vpop.xlane.xlu0 %690
        %v692 = vsel %vm535, %v685, -inf
        %693 = vmax.xlane.f32.xlu0 %v692
        %v694 = vpop.xlane.xlu0 %693
        %vm695 = vcmp.ge.f32.partialorder %v683, %v688
        %vm696 = vcmp.ge.f32.partialorder %v684, %v691
        %vm697 = vcmp.ge.f32.partialorder %v685, %v694
        %v698 = vsel %vm695, %v531, 8
        %v699 = vsel %vm696, %v531, 8
        %v700 = vsel %vm697, %v531, 8
        %v701 = vsel %vm535, %v698, 2147483647
        %v702 = vand.u32 %v701, 65535
        %v703 = vshra.s32 %v701, 16
        %v704 = vcvt.s32.f32 %v702
        %v705 = vcvt.s32.f32 %v703
        %706 = vmin.xlane.f32.xlu0 %v705
        %v707 = vpop.xlane.xlu0 %706
        %vm708 = vcmp.eq.f32.partialorder %v705, %v707
        %v709 = vsel %vm708, %v704, inf
        %710 = vmin.xlane.f32.xlu0 %v709
        %v711 = vpop.xlane.xlu0 %710
        %v712 = vcvt.f32.s32 %v711
        %v713 = vcvt.f32.s32 %v707
        %v714 = vshll.u32 %v713, 16
        %v715 = vadd.s32 %v714, %v712
        %v716 = vsel %vm535, %v699, 2147483647
        %v717 = vand.u32 %v716, 65535
        %v718 = vshra.s32 %v716, 16
        %v719 = vcvt.s32.f32 %v717
        %v720 = vcvt.s32.f32 %v718
        %721 = vmin.xlane.f32.xlu0 %v720
        %v722 = vpop.xlane.xlu0 %721
        %vm723 = vcmp.eq.f32.partialorder %v720, %v722
        %v724 = vsel %vm723, %v719, inf
        %725 = vmin.xlane.f32.xlu0 %v724
        %v726 = vpop.xlane.xlu0 %725
        %v727 = vcvt.f32.s32 %v726
        %v728 = vcvt.f32.s32 %v722
        %v729 = vshll.u32 %v728, 16
        %v730 = vadd.s32 %v729, %v727
        %v731 = vsel %vm535, %v700, 2147483647
        %v732 = vand.u32 %v731, 65535
        %v733 = vshra.s32 %v731, 16
        %v734 = vcvt.s32.f32 %v732
        %v735 = vcvt.s32.f32 %v733
        %736 = vmin.xlane.f32.xlu0 %v735
        %v737 = vpop.xlane.xlu0 %736
        %vm738 = vcmp.eq.f32.partialorder %v735, %v737
        %v739 = vsel %vm738, %v734, inf
        %740 = vmin.xlane.f32.xlu0 %v739
        %v741 = vpop.xlane.xlu0 %740
        %v742 = vcvt.f32.s32 %v741
        %v743 = vcvt.f32.s32 %v737
        %v744 = vshll.u32 %v743, 16
        %v745 = vadd.s32 %v744, %v742
        %vm746 = vcmp.eq.s32.totalorder %v531, %v715
        %vm747 = vcmp.eq.s32.totalorder %v531, %v730
        %vm748 = vcmp.eq.s32.totalorder %v531, %v745
        %v749 = vsel %vm746, 1, 0
        %v750 = vsel %vm747, 1, 0
        %v751 = vsel %vm748, 1, 0
        %v752 = vcvt.s32.f32 %v749
        %v753 = vcvt.s32.f32 %v750
        %v754 = vcvt.s32.f32 %v751
        %v755 = vadd.f32 %v680, %v752
        %v756 = vadd.f32 %v681, %v753
        %v757 = vadd.f32 %v682, %v754
        %v759 = vsel %vm535, %v755, 0
        %761 = vmatpush.msra.mxu0 0.0
        %762 = vmatpush.msra.mxu0 0.0
        %763 = vmatpush.msra.mxu0 0.0
        %764 = vmatpush.msra.mxu0 0.0
        %765 = vmatpush.msra.mxu0 0.0
        %766 = vmatpush.msra.mxu0 0.0
        %767 = vmatpush.msra.mxu0 0.0
        %768 = vmatpush.msra.mxu0 0.0
        %769 = vmatpush.msra.mxu0 0.0
        %770 = vmatpush.msra.mxu0 0.0
        %771 = vmatpush.msra.mxu0 0.0
        %772 = vmatpush.msra.mxu0 0.0
        %773 = vmatpush.msra.mxu0 0.0
        %774 = vmatpush.msra.mxu0 0.0
        %775 = vmatpush.msra.mxu0 0.0
        %776 = vmatpush.msra.mxu0 %v456
        %777 = vmatmul.f32.gmra.mxu0 %v759
        %v778 = vpop.f32.mrf.mxu0
        %v779 = vadd.f32 0.0, %v778
        %780 = vdwg.mxu0
        %v782 = vsel %vm535, %v756, 0
        %784 = vmatpush.msra.mxu0 0.0
        %785 = vmatpush.msra.mxu0 0.0
        %786 = vmatpush.msra.mxu0 0.0
        %787 = vmatpush.msra.mxu0 0.0
        %788 = vmatpush.msra.mxu0 0.0
        %789 = vmatpush.msra.mxu0 0.0
        %790 = vmatpush.msra.mxu0 0.0
        %791 = vmatpush.msra.mxu0 0.0
        %792 = vmatpush.msra.mxu0 0.0
        %793 = vmatpush.msra.mxu0 0.0
        %794 = vmatpush.msra.mxu0 0.0
        %795 = vmatpush.msra.mxu0 0.0
        %796 = vmatpush.msra.mxu0 0.0
        %797 = vmatpush.msra.mxu0 0.0
        %798 = vmatpush.msra.mxu0 0.0
        %799 = vmatpush.msra.mxu0 %v457
        %800 = vmatmul.f32.gmra.mxu0 %v782
        %v801 = vpop.f32.mrf.mxu0
        %v802 = vadd.f32 0.0, %v801
        %803 = vdwg.mxu0
        %v805 = vsel %vm535, %v757, 0
        %807 = vmatpush.msra.mxu0 0.0
        %808 = vmatpush.msra.mxu0 0.0
        %809 = vmatpush.msra.mxu0 0.0
        %810 = vmatpush.msra.mxu0 0.0
        %811 = vmatpush.msra.mxu0 0.0
        %812 = vmatpush.msra.mxu0 0.0
        %813 = vmatpush.msra.mxu0 0.0
        %814 = vmatpush.msra.mxu0 0.0
        %815 = vmatpush.msra.mxu0 0.0
        %816 = vmatpush.msra.mxu0 0.0
        %817 = vmatpush.msra.mxu0 0.0
        %818 = vmatpush.msra.mxu0 0.0
        %819 = vmatpush.msra.mxu0 0.0
        %820 = vmatpush.msra.mxu0 0.0
        %821 = vmatpush.msra.mxu0 0.0
        %822 = vmatpush.msra.mxu0 %v458
        %823 = vmatmul.f32.gmra.mxu0 %v805
        %v824 = vpop.f32.mrf.mxu0
        %v825 = vadd.f32 0.0, %v824
        %826 = vdwg.mxu0
        %v827 = vmul.f32 %v779, 0.25
        %v828 = vmul.f32 %v802, 0.25
        %v829 = vmul.f32 %v825, 0.25
        %830 = vst.msk [vmem:[%s269] sm:$0xff] %vm325, %v827
        %831 = vst.msk [vmem:[%s269 + $0x8] sm:$0xff] %vm325, %v828
        %832 = vst.msk [vmem:[%s269 + $0x10] sm:$0xff] %vm325, %v829
      $region48: #{gcnnet_volleyball_forward.3} parent=39 // pred_fallthru
        _
      %p833 = scmp.lt.s32.totalorder %s20, 1
      %s834 = scalar_select %p833, %s20, 1
      %s835 = smul.addr %s834, 3
      %s836 = smul.addr %s835, 8
      %s837 = scalar_lea.vmem %s5, %s836
      // Predicated region
      $region49: #{gcnnet_volleyball_forward.3} parent=39 // pred_check
        %p838 = pneg %p163
      $region50: #{gcnnet_volleyball_forward.3} parent=39 // pred_check_branch
        %840 = sbr.rel (%p838) target = $region52
      $region51: #{gcnnet_volleyball_forward.3} parent=39 // pred_region
        _
      $region52: #{gcnnet_volleyball_forward.3} parent=39 // pred_fallthru
        _
    $region40: #{gcnnet_volleyball_forward.3} parent=5 // pred_fallthru
      _
    %p841 = scmp.le.s32.totalorder 2, %s11
    // Predicated region
    $region53: #{gcnnet_volleyball_forward.3} parent=5 // pred_check
      %p842 = pneg %p841
    $region54: #{gcnnet_volleyball_forward.3} parent=5 // pred_check_branch
      %844 = sbr.rel (%p842) target = $region56
    $region55: #{gcnnet_volleyball_forward.3} parent=5 // pred_region
      %s845 = ssub.s32 %s11, 2
      // Predicated region
      $region57: #{gcnnet_volleyball_forward.3} parent=55 // pred_check
        %p846 = pneg %p169
      $region58: #{gcnnet_volleyball_forward.3} parent=55 // pred_check_branch
        %848 = sbr.rel (%p846) target = $region60
      $region59: #{gcnnet_volleyball_forward.3} parent=55 // pred_region
        %p849 = scmp.lt.s32.totalorder %s22, 1
        %s850 = scalar_select %p849, %s22, 1
        %s851 = smul.addr %s850, 3
        %s852 = smul.addr %s851, 8
        %s853 = scalar_lea.vmem %s5, %s852
      $region60: #{gcnnet_volleyball_forward.3} parent=55 // pred_fallthru
        _
    $region56: #{gcnnet_volleyball_forward.3} parent=5 // pred_fallthru
      _
  $region6: #{gcnnet_volleyball_forward.3} parent=0 // loop_footer
    %s15 = sadd.s32 1, %s11
  $region7: #{gcnnet_volleyball_forward.3} parent=0 // loop_footer_branch
    %10 = sbr.rel target = $region3
  $region8: #{gcnnet_volleyball_forward.3} parent=0 // loop_exit
    _

</llo_original>
